<compile_context>
chip_gen: v6e
topology: v6e:2x2x1
jax: 0.10.0
libtpu: 0.0.40
codegen_flags: <defaults>
</compile_context>

<pallas_src>
import functools

import jax
import jax.numpy as jnp
from jax import lax
from jax.experimental import pallas as pl
from jax.experimental.pallas import tpu as pltpu


def _sepconv_kernel(*refs, ksize, th, wo, main_rows, has_halo):
    """One (batch, output-row-tile) grid step.

    Refs (has_halo=True):
      x_ref    : (1, main_rows, Cin, Wp)  padded-input rows [t*TH, t*TH+main_rows)  (NHCW)
      halo_ref : (1, K-1, Cin, Wp)        padded-input rows [(t+1)*TH, (t+1)*TH+K-1)
      dw_ref   : (K, K, Cin, 1)           depthwise weights, f32
      pw_ref   : (Cout, Cin)              pointwise weights, bf16 (MXU operand)
      o_ref    : (1, Cout, TH, Wo)        output tile, NCHW
    Without a halo, main_rows covers every row the tile needs and halo_ref is absent.
    """
    if has_halo:
        x_ref, halo_ref, dw_ref, pw_ref, o_ref = refs
    else:
        x_ref, dw_ref, pw_ref, o_ref = refs
        halo_ref = None

    K = ksize
    # Per-tap depthwise weights, loaded once per grid step; (Cin, 1) so they
    # lane-broadcast against (Cin, Wo) windows with no value relayout.
    w_taps = [[dw_ref[kh, kw] for kw in range(K)] for kh in range(K)]
    pwv = pw_ref[...]                                  # (Cout, Cin) bf16

    for r in range(th):                                # static unroll over tile rows
        # Depthwise KxK: register-resident accumulation over the K*K taps (VPU).
        acc = None
        for kh in range(K):
            row = r + kh                               # padded row inside the window
            for kw in range(K):
                if row < main_rows:                    # static (Python) choice of source
                    win = x_ref[0, row, :, kw:kw + wo]             # (Cin, Wo)
                else:
                    win = halo_ref[0, row - main_rows, :, kw:kw + wo]
                term = win.astype(jnp.float32) * w_taps[kh][kw]    # f32 MAC
                acc = term if acc is None else acc + term
        # Pointwise 1x1 conv for this row: (Cout, Cin) @ (Cin, Wo) on the MXU,
        # bf16 operands, f32 accumulation.
        out_r = jnp.dot(pwv, acc.astype(jnp.bfloat16),
                        preferred_element_type=jnp.float32)        # (Cout, Wo)
        o_ref[0, :, r, :] = out_r.astype(o_ref.dtype)


def _pick_row_tile(ho, k):
    """Output-row tile: multiple of 8 (output block constraint), divides Ho,
    multiple of K-1 (exact halo block offsets); prefer >= 2 tiles for pipelining
    and v7x dual-core utilization."""
    cands = [c for c in (32, 16, 8)
             if ho % c == 0 and (k == 1 or c % (k - 1) == 0)]
    for c in cands:                     # descending order -> largest with >= 2 tiles
        if ho // c >= 2:
            return c
    return cands[0] if cands else ho    # single tile (no halo path)


def separable_conv2d(x_nchw, dw_weight, pw_weight, *, stride=1, padding=0, dilation=1):
    """x_nchw: (N, Cin, H, W); dw_weight: (Cin, 1, K, K) [PyTorch depthwise layout];
    pw_weight: (Cout, Cin, 1, 1) [PyTorch layout].  bias=False, stride=1, dilation=1."""
    if stride != 1 or dilation != 1:
        # TODO(synk): stride != 1 / dilation != 1 not implemented in the kernel.
        raise NotImplementedError("Pallas SeparableConv2d supports stride=1, dilation=1 only")

    N, Cin, H, W = x_nchw.shape
    K = dw_weight.shape[-1]
    Cout = pw_weight.shape[0]
    Ho = H + 2 * padding - (K - 1)
    Wo = W + 2 * padding - (K - 1)
    assert Ho > 0 and Wo > 0, (Ho, Wo)

    TH = _pick_row_tile(Ho, K)
    T = Ho // TH
    use_halo = (K > 1) and (T > 1)
    # Rows resident in the main input block per step.
    main_block_rows = TH if (use_halo or K == 1) else TH + (K - 1)

    Hp = Ho + K - 1                     # = H + 2*padding
    Wp = W + 2 * padding                # = Wo + K - 1

    # Layout glue (tiny / one fused pad+transpose of the input):
    #   input  -> NHCW so the kernel sees (Cin, Wp) dense minor dims (W on lanes),
    #   dw     -> (K, K, Cin, 1) f32 so per-tap weights load as (Cin, 1) directly,
    #   pw     -> (Cout, Cin) bf16 MXU operand.
    x_nhcw = jnp.transpose(x_nchw, (0, 2, 1, 3))
    xp = jnp.pad(x_nhcw, ((0, 0), (padding, padding), (0, 0), (padding, padding)))
    dw = jnp.transpose(dw_weight[:, 0, :, :], (1, 2, 0))[..., None].astype(jnp.float32)
    pw = pw_weight[:, :, 0, 0].astype(jnp.bfloat16)

    main_spec = pl.BlockSpec((1, main_block_rows, Cin, Wp), lambda n, t: (n, t, 0, 0))
    dw_spec = pl.BlockSpec((K, K, Cin, 1), lambda n, t: (0, 0, 0, 0))
    pw_spec = pl.BlockSpec((Cout, Cin), lambda n, t: (0, 0))
    out_spec = pl.BlockSpec((1, Cout, TH, Wo), lambda n, t: (n, 0, t, 0))

    if use_halo:
        halo_spec = pl.BlockSpec(
            (1, K - 1, Cin, Wp),
            lambda n, t: (n, (t + 1) * (TH // (K - 1)), 0, 0))
        in_specs = [main_spec, halo_spec, dw_spec, pw_spec]
        operands = (xp, xp, dw, pw)      # same padded array viewed twice
    else:
        in_specs = [main_spec, dw_spec, pw_spec]
        operands = (xp, dw, pw)

    out = pl.pallas_call(
        functools.partial(_sepconv_kernel, ksize=K, th=TH, wo=Wo,
                          main_rows=main_block_rows, has_halo=use_halo),
        out_shape=jax.ShapeDtypeStruct((N, Cout, Ho, Wo), x_nchw.dtype),
        grid_spec=pltpu.PrefetchScalarGridSpec(
            num_scalar_prefetch=0,
            grid=(N, T),
            in_specs=in_specs,
            out_specs=out_spec,
        ),
        compiler_params=pltpu.CompilerParams(
            dimension_semantics=("parallel", "parallel"),
            # Row tiling keeps per-step VMEM tiny; 32 MiB is safe on v5e/v6e/v7x.
            vmem_limit_bytes=32 * 1024 * 1024,
        ),
    )(*operands)
    return out                           # already NCHW, no wrapper slice/transpose


def _reference(x_nchw, dw_weight, pw_weight, *, padding=0):
    """Plain-JAX reference matching PyTorch semantics (for verification)."""
    Cin = x_nchw.shape[1]
    y = lax.conv_general_dilated(
        x_nchw, dw_weight, window_strides=(1, 1),
        padding=((padding, padding), (padding, padding)),
        dimension_numbers=("NCHW", "OIHW", "NCHW"),
        feature_group_count=Cin, precision=lax.Precision.HIGHEST)
    z = lax.conv_general_dilated(
        y, pw_weight, window_strides=(1, 1), padding="VALID",
        dimension_numbers=("NCHW", "OIHW", "NCHW"),
        precision=lax.Precision.HIGHEST)
    return z


if __name__ == "__main__":
    key = jax.random.PRNGKey(0)
    k_x, k_dw, k_pw = jax.random.split(key, 3)

    N, Cin, Cout, H, W, K, PAD = 2, 4, 8, 16, 16, 3, 1

    x = jax.random.normal(k_x, (N, Cin, H, W), dtype=jnp.float32)
    # PyTorch parameter shapes:
    #   conv1.weight     : (Cin, 1, K, K)    (depthwise, groups=Cin, bias=False)
    #   pointwise.weight : (Cout, Cin, 1, 1) (bias=False)
    dw_weight = jax.random.normal(k_dw, (Cin, 1, K, K), dtype=jnp.float32) * 0.1
    pw_weight = jax.random.normal(k_pw, (Cout, Cin, 1, 1), dtype=jnp.float32) * 0.1

    out = separable_conv2d(x, dw_weight, pw_weight, padding=PAD)
    out = jax.block_until_ready(out)

    ref = jax.block_until_ready(_reference(x, dw_weight, pw_weight, padding=PAD))
    assert out.shape == (N, Cout, H, W), out.shape
    # bf16 MXU operands (f32 accumulation) -> loosened tolerance vs. the f32 reference.
    max_err = float(jnp.max(jnp.abs(out - ref)))
    assert jnp.allclose(out, ref, atol=2e-2, rtol=2e-2), max_err

    print("KERNEL_OK")
</pallas_src>

<mosaic_0001>
module attributes {stable_mosaic.version = 11 : i64} {
  func.func @_sepconv_kernel(%arg0: i32, %arg1: i32, %arg2: memref<1x8x4x18xf32, #tpu.memory_space<vmem>>, %arg3: memref<1x2x4x18xf32, #tpu.memory_space<vmem>>, %arg4: memref<3x3x4x1xf32, #tpu.memory_space<vmem>>, %arg5: memref<8x4xbf16, #tpu.memory_space<vmem>>, %arg6: memref<1x8x8x16xf32, #tpu.memory_space<vmem>>) attributes {dimension_semantics = [#tpu.dimension_semantics<parallel>, #tpu.dimension_semantics<parallel>], iteration_bounds = array<i64: 2, 2>, scalar_prefetch = 0 : i64, scratch_operands = 0 : i64, tpu.core_type = #tpu.core_type<tc>, window_params = [{transform_indices = @transform_0, window_bounds = array<i64: 1, 8, 4, 18>}, {transform_indices = @transform_1, window_bounds = array<i64: 1, 2, 4, 18>}, {pipeline_mode = #tpu.pipeline_mode<synchronous>, transform_indices = @transform_2, window_bounds = array<i64: 3, 3, 4, 1>}, {pipeline_mode = #tpu.pipeline_mode<synchronous>, transform_indices = @transform_3, window_bounds = array<i64: 8, 4>}, {transform_indices = @transform_4, window_bounds = array<i64: 1, 8, 8, 16>}]} {
    %c0 = arith.constant 0 : index
    %c0_0 = arith.constant 0 : index
    %c0_1 = arith.constant 0 : index
    %c0_2 = arith.constant 0 : index
    %0 = vector.load %arg4[%c0, %c0_0, %c0_1, %c0_2] : memref<3x3x4x1xf32, #tpu.memory_space<vmem>>, vector<1x1x4x1xf32>
    %1 = vector.shape_cast %0 : vector<1x1x4x1xf32> to vector<4x1xf32>
    %c0_3 = arith.constant 0 : index
    %c1 = arith.constant 1 : index
    %c0_4 = arith.constant 0 : index
    %c0_5 = arith.constant 0 : index
    %2 = vector.load %arg4[%c0_3, %c1, %c0_4, %c0_5] : memref<3x3x4x1xf32, #tpu.memory_space<vmem>>, vector<1x1x4x1xf32>
    %3 = vector.shape_cast %2 : vector<1x1x4x1xf32> to vector<4x1xf32>
    %c0_6 = arith.constant 0 : index
    %c2 = arith.constant 2 : index
    %c0_7 = arith.constant 0 : index
    %c0_8 = arith.constant 0 : index
    %4 = vector.load %arg4[%c0_6, %c2, %c0_7, %c0_8] : memref<3x3x4x1xf32, #tpu.memory_space<vmem>>, vector<1x1x4x1xf32>
    %5 = vector.shape_cast %4 : vector<1x1x4x1xf32> to vector<4x1xf32>
    %c1_9 = arith.constant 1 : index
    %c0_10 = arith.constant 0 : index
    %c0_11 = arith.constant 0 : index
    %c0_12 = arith.constant 0 : index
    %6 = vector.load %arg4[%c1_9, %c0_10, %c0_11, %c0_12] : memref<3x3x4x1xf32, #tpu.memory_space<vmem>>, vector<1x1x4x1xf32>
    %7 = vector.shape_cast %6 : vector<1x1x4x1xf32> to vector<4x1xf32>
    %c1_13 = arith.constant 1 : index
    %c1_14 = arith.constant 1 : index
    %c0_15 = arith.constant 0 : index
    %c0_16 = arith.constant 0 : index
    %8 = vector.load %arg4[%c1_13, %c1_14, %c0_15, %c0_16] : memref<3x3x4x1xf32, #tpu.memory_space<vmem>>, vector<1x1x4x1xf32>
    %9 = vector.shape_cast %8 : vector<1x1x4x1xf32> to vector<4x1xf32>
    %c1_17 = arith.constant 1 : index
    %c2_18 = arith.constant 2 : index
    %c0_19 = arith.constant 0 : index
    %c0_20 = arith.constant 0 : index
    %10 = vector.load %arg4[%c1_17, %c2_18, %c0_19, %c0_20] : memref<3x3x4x1xf32, #tpu.memory_space<vmem>>, vector<1x1x4x1xf32>
    %11 = vector.shape_cast %10 : vector<1x1x4x1xf32> to vector<4x1xf32>
    %c2_21 = arith.constant 2 : index
    %c0_22 = arith.constant 0 : index
    %c0_23 = arith.constant 0 : index
    %c0_24 = arith.constant 0 : index
    %12 = vector.load %arg4[%c2_21, %c0_22, %c0_23, %c0_24] : memref<3x3x4x1xf32, #tpu.memory_space<vmem>>, vector<1x1x4x1xf32>
    %13 = vector.shape_cast %12 : vector<1x1x4x1xf32> to vector<4x1xf32>
    %c2_25 = arith.constant 2 : index
    %c1_26 = arith.constant 1 : index
    %c0_27 = arith.constant 0 : index
    %c0_28 = arith.constant 0 : index
    %14 = vector.load %arg4[%c2_25, %c1_26, %c0_27, %c0_28] : memref<3x3x4x1xf32, #tpu.memory_space<vmem>>, vector<1x1x4x1xf32>
    %15 = vector.shape_cast %14 : vector<1x1x4x1xf32> to vector<4x1xf32>
    %c2_29 = arith.constant 2 : index
    %c2_30 = arith.constant 2 : index
    %c0_31 = arith.constant 0 : index
    %c0_32 = arith.constant 0 : index
    %16 = vector.load %arg4[%c2_29, %c2_30, %c0_31, %c0_32] : memref<3x3x4x1xf32, #tpu.memory_space<vmem>>, vector<1x1x4x1xf32>
    %17 = vector.shape_cast %16 : vector<1x1x4x1xf32> to vector<4x1xf32>
    %c0_33 = arith.constant 0 : index
    %c0_34 = arith.constant 0 : index
    %18 = vector.load %arg5[%c0_33, %c0_34] : memref<8x4xbf16, #tpu.memory_space<vmem>>, vector<8x4xbf16>
    %c0_35 = arith.constant 0 : index
    %c0_36 = arith.constant 0 : index
    %c0_37 = arith.constant 0 : index
    %c0_38 = arith.constant 0 : index
    %19 = vector.load %arg2[%c0_35, %c0_36, %c0_37, %c0_38] : memref<1x8x4x18xf32, #tpu.memory_space<vmem>>, vector<1x1x4x16xf32>
    %20 = vector.shape_cast %19 : vector<1x1x4x16xf32> to vector<4x16xf32>
    %21 = vector.broadcast %1 : vector<4x1xf32> to vector<4x16xf32>
    %22 = arith.mulf %20, %21 : vector<4x16xf32>
    %c0_39 = arith.constant 0 : index
    %c0_40 = arith.constant 0 : index
    %c0_41 = arith.constant 0 : index
    %c1_42 = arith.constant 1 : index
    %23 = vector.load %arg2[%c0_39, %c0_40, %c0_41, %c1_42] : memref<1x8x4x18xf32, #tpu.memory_space<vmem>>, vector<1x1x4x16xf32>
    %24 = vector.shape_cast %23 : vector<1x1x4x16xf32> to vector<4x16xf32>
    %25 = vector.broadcast %3 : vector<4x1xf32> to vector<4x16xf32>
    %26 = arith.mulf %24, %25 : vector<4x16xf32>
    %27 = arith.addf %22, %26 : vector<4x16xf32>
    %c0_43 = arith.constant 0 : index
    %c0_44 = arith.constant 0 : index
    %c0_45 = arith.constant 0 : index
    %c2_46 = arith.constant 2 : index
    %28 = vector.load %arg2[%c0_43, %c0_44, %c0_45, %c2_46] : memref<1x8x4x18xf32, #tpu.memory_space<vmem>>, vector<1x1x4x16xf32>
    %29 = vector.shape_cast %28 : vector<1x1x4x16xf32> to vector<4x16xf32>
    %30 = vector.broadcast %5 : vector<4x1xf32> to vector<4x16xf32>
    %31 = arith.mulf %29, %30 : vector<4x16xf32>
    %32 = arith.addf %27, %31 : vector<4x16xf32>
    %c0_47 = arith.constant 0 : index
    %c1_48 = arith.constant 1 : index
    %c0_49 = arith.constant 0 : index
    %c0_50 = arith.constant 0 : index
    %33 = vector.load %arg2[%c0_47, %c1_48, %c0_49, %c0_50] : memref<1x8x4x18xf32, #tpu.memory_space<vmem>>, vector<1x1x4x16xf32>
    %34 = vector.shape_cast %33 : vector<1x1x4x16xf32> to vector<4x16xf32>
    %35 = vector.broadcast %7 : vector<4x1xf32> to vector<4x16xf32>
    %36 = arith.mulf %34, %35 : vector<4x16xf32>
    %37 = arith.addf %32, %36 : vector<4x16xf32>
    %c0_51 = arith.constant 0 : index
    %c1_52 = arith.constant 1 : index
    %c0_53 = arith.constant 0 : index
    %c1_54 = arith.constant 1 : index
    %38 = vector.load %arg2[%c0_51, %c1_52, %c0_53, %c1_54] : memref<1x8x4x18xf32, #tpu.memory_space<vmem>>, vector<1x1x4x16xf32>
    %39 = vector.shape_cast %38 : vector<1x1x4x16xf32> to vector<4x16xf32>
    %40 = vector.broadcast %9 : vector<4x1xf32> to vector<4x16xf32>
    %41 = arith.mulf %39, %40 : vector<4x16xf32>
    %42 = arith.addf %37, %41 : vector<4x16xf32>
    %c0_55 = arith.constant 0 : index
    %c1_56 = arith.constant 1 : index
    %c0_57 = arith.constant 0 : index
    %c2_58 = arith.constant 2 : index
    %43 = vector.load %arg2[%c0_55, %c1_56, %c0_57, %c2_58] : memref<1x8x4x18xf32, #tpu.memory_space<vmem>>, vector<1x1x4x16xf32>
    %44 = vector.shape_cast %43 : vector<1x1x4x16xf32> to vector<4x16xf32>
    %45 = vector.broadcast %11 : vector<4x1xf32> to vector<4x16xf32>
    %46 = arith.mulf %44, %45 : vector<4x16xf32>
    %47 = arith.addf %42, %46 : vector<4x16xf32>
    %c0_59 = arith.constant 0 : index
    %c2_60 = arith.constant 2 : index
    %c0_61 = arith.constant 0 : index
    %c0_62 = arith.constant 0 : index
    %48 = vector.load %arg2[%c0_59, %c2_60, %c0_61, %c0_62] : memref<1x8x4x18xf32, #tpu.memory_space<vmem>>, vector<1x1x4x16xf32>
    %49 = vector.shape_cast %48 : vector<1x1x4x16xf32> to vector<4x16xf32>
    %50 = vector.broadcast %13 : vector<4x1xf32> to vector<4x16xf32>
    %51 = arith.mulf %49, %50 : vector<4x16xf32>
    %52 = arith.addf %47, %51 : vector<4x16xf32>
    %c0_63 = arith.constant 0 : index
    %c2_64 = arith.constant 2 : index
    %c0_65 = arith.constant 0 : index
    %c1_66 = arith.constant 1 : index
    %53 = vector.load %arg2[%c0_63, %c2_64, %c0_65, %c1_66] : memref<1x8x4x18xf32, #tpu.memory_space<vmem>>, vector<1x1x4x16xf32>
    %54 = vector.shape_cast %53 : vector<1x1x4x16xf32> to vector<4x16xf32>
    %55 = vector.broadcast %15 : vector<4x1xf32> to vector<4x16xf32>
    %56 = arith.mulf %54, %55 : vector<4x16xf32>
    %57 = arith.addf %52, %56 : vector<4x16xf32>
    %c0_67 = arith.constant 0 : index
    %c2_68 = arith.constant 2 : index
    %c0_69 = arith.constant 0 : index
    %c2_70 = arith.constant 2 : index
    %58 = vector.load %arg2[%c0_67, %c2_68, %c0_69, %c2_70] : memref<1x8x4x18xf32, #tpu.memory_space<vmem>>, vector<1x1x4x16xf32>
    %59 = vector.shape_cast %58 : vector<1x1x4x16xf32> to vector<4x16xf32>
    %60 = vector.broadcast %17 : vector<4x1xf32> to vector<4x16xf32>
    %61 = arith.mulf %59, %60 : vector<4x16xf32>
    %62 = arith.addf %57, %61 : vector<4x16xf32>
    %63 = arith.truncf %62 : vector<4x16xf32> to vector<4x16xbf16>
    %cst = arith.constant dense<0.000000e+00> : vector<8x16xf32>
    %64 = tpu.matmul %18, %63, %cst {dimension_numbers = #tpu.dot_dimension_numbers<[1], [0], [0], [1], [0, 0, 1, 1], [], []>} : vector<8x4xbf16>, vector<4x16xbf16>, vector<8x16xf32> -> vector<8x16xf32>
    %c0_71 = arith.constant 0 : index
    %c0_72 = arith.constant 0 : index
    %c0_73 = arith.constant 0 : index
    %c0_74 = arith.constant 0 : index
    %65 = vector.load %arg6[%c0_71, %c0_72, %c0_73, %c0_74] : memref<1x8x8x16xf32, #tpu.memory_space<vmem>>, vector<1x8x1x16xf32>
    %66 = vector.shape_cast %65 : vector<1x8x1x16xf32> to vector<8x16xf32>
    %67 = vector.shape_cast %64 : vector<8x16xf32> to vector<1x8x1x16xf32>
    tpu.vector_store %arg6[%c0_71, %c0_72, %c0_73, %c0_74], %67 {strides = array<i32>} : memref<1x8x8x16xf32, #tpu.memory_space<vmem>>, vector<1x8x1x16xf32>,
    %c0_75 = arith.constant 0 : index
    %c1_76 = arith.constant 1 : index
    %c0_77 = arith.constant 0 : index
    %c0_78 = arith.constant 0 : index
    %68 = vector.load %arg2[%c0_75, %c1_76, %c0_77, %c0_78] : memref<1x8x4x18xf32, #tpu.memory_space<vmem>>, vector<1x1x4x16xf32>
    %69 = vector.shape_cast %68 : vector<1x1x4x16xf32> to vector<4x16xf32>
    %70 = vector.broadcast %1 : vector<4x1xf32> to vector<4x16xf32>
    %71 = arith.mulf %69, %70 : vector<4x16xf32>
    %c0_79 = arith.constant 0 : index
    %c1_80 = arith.constant 1 : index
    %c0_81 = arith.constant 0 : index
    %c1_82 = arith.constant 1 : index
    %72 = vector.load %arg2[%c0_79, %c1_80, %c0_81, %c1_82] : memref<1x8x4x18xf32, #tpu.memory_space<vmem>>, vector<1x1x4x16xf32>
    %73 = vector.shape_cast %72 : vector<1x1x4x16xf32> to vector<4x16xf32>
    %74 = vector.broadcast %3 : vector<4x1xf32> to vector<4x16xf32>
    %75 = arith.mulf %73, %74 : vector<4x16xf32>
    %76 = arith.addf %71, %75 : vector<4x16xf32>
    %c0_83 = arith.constant 0 : index
    %c1_84 = arith.constant 1 : index
    %c0_85 = arith.constant 0 : index
    %c2_86 = arith.constant 2 : index
    %77 = vector.load %arg2[%c0_83, %c1_84, %c0_85, %c2_86] : memref<1x8x4x18xf32, #tpu.memory_space<vmem>>, vector<1x1x4x16xf32>
    %78 = vector.shape_cast %77 : vector<1x1x4x16xf32> to vector<4x16xf32>
    %79 = vector.broadcast %5 : vector<4x1xf32> to vector<4x16xf32>
    %80 = arith.mulf %78, %79 : vector<4x16xf32>
    %81 = arith.addf %76, %80 : vector<4x16xf32>
    %c0_87 = arith.constant 0 : index
    %c2_88 = arith.constant 2 : index
    %c0_89 = arith.constant 0 : index
    %c0_90 = arith.constant 0 : index
    %82 = vector.load %arg2[%c0_87, %c2_88, %c0_89, %c0_90] : memref<1x8x4x18xf32, #tpu.memory_space<vmem>>, vector<1x1x4x16xf32>
    %83 = vector.shape_cast %82 : vector<1x1x4x16xf32> to vector<4x16xf32>
    %84 = vector.broadcast %7 : vector<4x1xf32> to vector<4x16xf32>
    %85 = arith.mulf %83, %84 : vector<4x16xf32>
    %86 = arith.addf %81, %85 : vector<4x16xf32>
    %c0_91 = arith.constant 0 : index
    %c2_92 = arith.constant 2 : index
    %c0_93 = arith.constant 0 : index
    %c1_94 = arith.constant 1 : index
    %87 = vector.load %arg2[%c0_91, %c2_92, %c0_93, %c1_94] : memref<1x8x4x18xf32, #tpu.memory_space<vmem>>, vector<1x1x4x16xf32>
    %88 = vector.shape_cast %87 : vector<1x1x4x16xf32> to vector<4x16xf32>
    %89 = vector.broadcast %9 : vector<4x1xf32> to vector<4x16xf32>
    %90 = arith.mulf %88, %89 : vector<4x16xf32>
    %91 = arith.addf %86, %90 : vector<4x16xf32>
    %c0_95 = arith.constant 0 : index
    %c2_96 = arith.constant 2 : index
    %c0_97 = arith.constant 0 : index
    %c2_98 = arith.constant 2 : index
    %92 = vector.load %arg2[%c0_95, %c2_96, %c0_97, %c2_98] : memref<1x8x4x18xf32, #tpu.memory_space<vmem>>, vector<1x1x4x16xf32>
    %93 = vector.shape_cast %92 : vector<1x1x4x16xf32> to vector<4x16xf32>
    %94 = vector.broadcast %11 : vector<4x1xf32> to vector<4x16xf32>
    %95 = arith.mulf %93, %94 : vector<4x16xf32>
    %96 = arith.addf %91, %95 : vector<4x16xf32>
    %c0_99 = arith.constant 0 : index
    %c3 = arith.constant 3 : index
    %c0_100 = arith.constant 0 : index
    %c0_101 = arith.constant 0 : index
    %97 = vector.load %arg2[%c0_99, %c3, %c0_100, %c0_101] : memref<1x8x4x18xf32, #tpu.memory_space<vmem>>, vector<1x1x4x16xf32>
    %98 = vector.shape_cast %97 : vector<1x1x4x16xf32> to vector<4x16xf32>
    %99 = vector.broadcast %13 : vector<4x1xf32> to vector<4x16xf32>
    %100 = arith.mulf %98, %99 : vector<4x16xf32>
    %101 = arith.addf %96, %100 : vector<4x16xf32>
    %c0_102 = arith.constant 0 : index
    %c3_103 = arith.constant 3 : index
    %c0_104 = arith.constant 0 : index
    %c1_105 = arith.constant 1 : index
    %102 = vector.load %arg2[%c0_102, %c3_103, %c0_104, %c1_105] : memref<1x8x4x18xf32, #tpu.memory_space<vmem>>, vector<1x1x4x16xf32>
    %103 = vector.shape_cast %102 : vector<1x1x4x16xf32> to vector<4x16xf32>
    %104 = vector.broadcast %15 : vector<4x1xf32> to vector<4x16xf32>
    %105 = arith.mulf %103, %104 : vector<4x16xf32>
    %106 = arith.addf %101, %105 : vector<4x16xf32>
    %c0_106 = arith.constant 0 : index
    %c3_107 = arith.constant 3 : index
    %c0_108 = arith.constant 0 : index
    %c2_109 = arith.constant 2 : index
    %107 = vector.load %arg2[%c0_106, %c3_107, %c0_108, %c2_109] : memref<1x8x4x18xf32, #tpu.memory_space<vmem>>, vector<1x1x4x16xf32>
    %108 = vector.shape_cast %107 : vector<1x1x4x16xf32> to vector<4x16xf32>
    %109 = vector.broadcast %17 : vector<4x1xf32> to vector<4x16xf32>
    %110 = arith.mulf %108, %109 : vector<4x16xf32>
    %111 = arith.addf %106, %110 : vector<4x16xf32>
    %112 = arith.truncf %111 : vector<4x16xf32> to vector<4x16xbf16>
    %cst_110 = arith.constant dense<0.000000e+00> : vector<8x16xf32>
    %113 = tpu.matmul %18, %112, %cst_110 {dimension_numbers = #tpu.dot_dimension_numbers<[1], [0], [0], [1], [0, 0, 1, 1], [], []>} : vector<8x4xbf16>, vector<4x16xbf16>, vector<8x16xf32> -> vector<8x16xf32>
    %c0_111 = arith.constant 0 : index
    %c0_112 = arith.constant 0 : index
    %c1_113 = arith.constant 1 : index
    %c0_114 = arith.constant 0 : index
    %114 = vector.load %arg6[%c0_111, %c0_112, %c1_113, %c0_114] : memref<1x8x8x16xf32, #tpu.memory_space<vmem>>, vector<1x8x1x16xf32>
    %115 = vector.shape_cast %114 : vector<1x8x1x16xf32> to vector<8x16xf32>
    %116 = vector.shape_cast %113 : vector<8x16xf32> to vector<1x8x1x16xf32>
    tpu.vector_store %arg6[%c0_111, %c0_112, %c1_113, %c0_114], %116 {strides = array<i32>} : memref<1x8x8x16xf32, #tpu.memory_space<vmem>>, vector<1x8x1x16xf32>,
    %c0_115 = arith.constant 0 : index
    %c2_116 = arith.constant 2 : index
    %c0_117 = arith.constant 0 : index
    %c0_118 = arith.constant 0 : index
    %117 = vector.load %arg2[%c0_115, %c2_116, %c0_117, %c0_118] : memref<1x8x4x18xf32, #tpu.memory_space<vmem>>, vector<1x1x4x16xf32>
    %118 = vector.shape_cast %117 : vector<1x1x4x16xf32> to vector<4x16xf32>
    %119 = vector.broadcast %1 : vector<4x1xf32> to vector<4x16xf32>
    %120 = arith.mulf %118, %119 : vector<4x16xf32>
    %c0_119 = arith.constant 0 : index
    %c2_120 = arith.constant 2 : index
    %c0_121 = arith.constant 0 : index
    %c1_122 = arith.constant 1 : index
    %121 = vector.load %arg2[%c0_119, %c2_120, %c0_121, %c1_122] : memref<1x8x4x18xf32, #tpu.memory_space<vmem>>, vector<1x1x4x16xf32>
    %122 = vector.shape_cast %121 : vector<1x1x4x16xf32> to vector<4x16xf32>
    %123 = vector.broadcast %3 : vector<4x1xf32> to vector<4x16xf32>
    %124 = arith.mulf %122, %123 : vector<4x16xf32>
    %125 = arith.addf %120, %124 : vector<4x16xf32>
    %c0_123 = arith.constant 0 : index
    %c2_124 = arith.constant 2 : index
    %c0_125 = arith.constant 0 : index
    %c2_126 = arith.constant 2 : index
    %126 = vector.load %arg2[%c0_123, %c2_124, %c0_125, %c2_126] : memref<1x8x4x18xf32, #tpu.memory_space<vmem>>, vector<1x1x4x16xf32>
    %127 = vector.shape_cast %126 : vector<1x1x4x16xf32> to vector<4x16xf32>
    %128 = vector.broadcast %5 : vector<4x1xf32> to vector<4x16xf32>
    %129 = arith.mulf %127, %128 : vector<4x16xf32>
    %130 = arith.addf %125, %129 : vector<4x16xf32>
    %c0_127 = arith.constant 0 : index
    %c3_128 = arith.constant 3 : index
    %c0_129 = arith.constant 0 : index
    %c0_130 = arith.constant 0 : index
    %131 = vector.load %arg2[%c0_127, %c3_128, %c0_129, %c0_130] : memref<1x8x4x18xf32, #tpu.memory_space<vmem>>, vector<1x1x4x16xf32>
    %132 = vector.shape_cast %131 : vector<1x1x4x16xf32> to vector<4x16xf32>
    %133 = vector.broadcast %7 : vector<4x1xf32> to vector<4x16xf32>
    %134 = arith.mulf %132, %133 : vector<4x16xf32>
    %135 = arith.addf %130, %134 : vector<4x16xf32>
    %c0_131 = arith.constant 0 : index
    %c3_132 = arith.constant 3 : index
    %c0_133 = arith.constant 0 : index
    %c1_134 = arith.constant 1 : index
    %136 = vector.load %arg2[%c0_131, %c3_132, %c0_133, %c1_134] : memref<1x8x4x18xf32, #tpu.memory_space<vmem>>, vector<1x1x4x16xf32>
    %137 = vector.shape_cast %136 : vector<1x1x4x16xf32> to vector<4x16xf32>
    %138 = vector.broadcast %9 : vector<4x1xf32> to vector<4x16xf32>
    %139 = arith.mulf %137, %138 : vector<4x16xf32>
    %140 = arith.addf %135, %139 : vector<4x16xf32>
    %c0_135 = arith.constant 0 : index
    %c3_136 = arith.constant 3 : index
    %c0_137 = arith.constant 0 : index
    %c2_138 = arith.constant 2 : index
    %141 = vector.load %arg2[%c0_135, %c3_136, %c0_137, %c2_138] : memref<1x8x4x18xf32, #tpu.memory_space<vmem>>, vector<1x1x4x16xf32>
    %142 = vector.shape_cast %141 : vector<1x1x4x16xf32> to vector<4x16xf32>
    %143 = vector.broadcast %11 : vector<4x1xf32> to vector<4x16xf32>
    %144 = arith.mulf %142, %143 : vector<4x16xf32>
    %145 = arith.addf %140, %144 : vector<4x16xf32>
    %c0_139 = arith.constant 0 : index
    %c4 = arith.constant 4 : index
    %c0_140 = arith.constant 0 : index
    %c0_141 = arith.constant 0 : index
    %146 = vector.load %arg2[%c0_139, %c4, %c0_140, %c0_141] : memref<1x8x4x18xf32, #tpu.memory_space<vmem>>, vector<1x1x4x16xf32>
    %147 = vector.shape_cast %146 : vector<1x1x4x16xf32> to vector<4x16xf32>
    %148 = vector.broadcast %13 : vector<4x1xf32> to vector<4x16xf32>
    %149 = arith.mulf %147, %148 : vector<4x16xf32>
    %150 = arith.addf %145, %149 : vector<4x16xf32>
    %c0_142 = arith.constant 0 : index
    %c4_143 = arith.constant 4 : index
    %c0_144 = arith.constant 0 : index
    %c1_145 = arith.constant 1 : index
    %151 = vector.load %arg2[%c0_142, %c4_143, %c0_144, %c1_145] : memref<1x8x4x18xf32, #tpu.memory_space<vmem>>, vector<1x1x4x16xf32>
    %152 = vector.shape_cast %151 : vector<1x1x4x16xf32> to vector<4x16xf32>
    %153 = vector.broadcast %15 : vector<4x1xf32> to vector<4x16xf32>
    %154 = arith.mulf %152, %153 : vector<4x16xf32>
    %155 = arith.addf %150, %154 : vector<4x16xf32>
    %c0_146 = arith.constant 0 : index
    %c4_147 = arith.constant 4 : index
    %c0_148 = arith.constant 0 : index
    %c2_149 = arith.constant 2 : index
    %156 = vector.load %arg2[%c0_146, %c4_147, %c0_148, %c2_149] : memref<1x8x4x18xf32, #tpu.memory_space<vmem>>, vector<1x1x4x16xf32>
    %157 = vector.shape_cast %156 : vector<1x1x4x16xf32> to vector<4x16xf32>
    %158 = vector.broadcast %17 : vector<4x1xf32> to vector<4x16xf32>
    %159 = arith.mulf %157, %158 : vector<4x16xf32>
    %160 = arith.addf %155, %159 : vector<4x16xf32>
    %161 = arith.truncf %160 : vector<4x16xf32> to vector<4x16xbf16>
    %cst_150 = arith.constant dense<0.000000e+00> : vector<8x16xf32>
    %162 = tpu.matmul %18, %161, %cst_150 {dimension_numbers = #tpu.dot_dimension_numbers<[1], [0], [0], [1], [0, 0, 1, 1], [], []>} : vector<8x4xbf16>, vector<4x16xbf16>, vector<8x16xf32> -> vector<8x16xf32>
    %c0_151 = arith.constant 0 : index
    %c0_152 = arith.constant 0 : index
    %c2_153 = arith.constant 2 : index
    %c0_154 = arith.constant 0 : index
    %163 = vector.load %arg6[%c0_151, %c0_152, %c2_153, %c0_154] : memref<1x8x8x16xf32, #tpu.memory_space<vmem>>, vector<1x8x1x16xf32>
    %164 = vector.shape_cast %163 : vector<1x8x1x16xf32> to vector<8x16xf32>
    %165 = vector.shape_cast %162 : vector<8x16xf32> to vector<1x8x1x16xf32>
    tpu.vector_store %arg6[%c0_151, %c0_152, %c2_153, %c0_154], %165 {strides = array<i32>} : memref<1x8x8x16xf32, #tpu.memory_space<vmem>>, vector<1x8x1x16xf32>,
    %c0_155 = arith.constant 0 : index
    %c3_156 = arith.constant 3 : index
    %c0_157 = arith.constant 0 : index
    %c0_158 = arith.constant 0 : index
    %166 = vector.load %arg2[%c0_155, %c3_156, %c0_157, %c0_158] : memref<1x8x4x18xf32, #tpu.memory_space<vmem>>, vector<1x1x4x16xf32>
    %167 = vector.shape_cast %166 : vector<1x1x4x16xf32> to vector<4x16xf32>
    %168 = vector.broadcast %1 : vector<4x1xf32> to vector<4x16xf32>
    %169 = arith.mulf %167, %168 : vector<4x16xf32>
    %c0_159 = arith.constant 0 : index
    %c3_160 = arith.constant 3 : index
    %c0_161 = arith.constant 0 : index
    %c1_162 = arith.constant 1 : index
    %170 = vector.load %arg2[%c0_159, %c3_160, %c0_161, %c1_162] : memref<1x8x4x18xf32, #tpu.memory_space<vmem>>, vector<1x1x4x16xf32>
    %171 = vector.shape_cast %170 : vector<1x1x4x16xf32> to vector<4x16xf32>
    %172 = vector.broadcast %3 : vector<4x1xf32> to vector<4x16xf32>
    %173 = arith.mulf %171, %172 : vector<4x16xf32>
    %174 = arith.addf %169, %173 : vector<4x16xf32>
    %c0_163 = arith.constant 0 : index
    %c3_164 = arith.constant 3 : index
    %c0_165 = arith.constant 0 : index
    %c2_166 = arith.constant 2 : index
    %175 = vector.load %arg2[%c0_163, %c3_164, %c0_165, %c2_166] : memref<1x8x4x18xf32, #tpu.memory_space<vmem>>, vector<1x1x4x16xf32>
    %176 = vector.shape_cast %175 : vector<1x1x4x16xf32> to vector<4x16xf32>
    %177 = vector.broadcast %5 : vector<4x1xf32> to vector<4x16xf32>
    %178 = arith.mulf %176, %177 : vector<4x16xf32>
    %179 = arith.addf %174, %178 : vector<4x16xf32>
    %c0_167 = arith.constant 0 : index
    %c4_168 = arith.constant 4 : index
    %c0_169 = arith.constant 0 : index
    %c0_170 = arith.constant 0 : index
    %180 = vector.load %arg2[%c0_167, %c4_168, %c0_169, %c0_170] : memref<1x8x4x18xf32, #tpu.memory_space<vmem>>, vector<1x1x4x16xf32>
    %181 = vector.shape_cast %180 : vector<1x1x4x16xf32> to vector<4x16xf32>
    %182 = vector.broadcast %7 : vector<4x1xf32> to vector<4x16xf32>
    %183 = arith.mulf %181, %182 : vector<4x16xf32>
    %184 = arith.addf %179, %183 : vector<4x16xf32>
    %c0_171 = arith.constant 0 : index
    %c4_172 = arith.constant 4 : index
    %c0_173 = arith.constant 0 : index
    %c1_174 = arith.constant 1 : index
    %185 = vector.load %arg2[%c0_171, %c4_172, %c0_173, %c1_174] : memref<1x8x4x18xf32, #tpu.memory_space<vmem>>, vector<1x1x4x16xf32>
    %186 = vector.shape_cast %185 : vector<1x1x4x16xf32> to vector<4x16xf32>
    %187 = vector.broadcast %9 : vector<4x1xf32> to vector<4x16xf32>
    %188 = arith.mulf %186, %187 : vector<4x16xf32>
    %189 = arith.addf %184, %188 : vector<4x16xf32>
    %c0_175 = arith.constant 0 : index
    %c4_176 = arith.constant 4 : index
    %c0_177 = arith.constant 0 : index
    %c2_178 = arith.constant 2 : index
    %190 = vector.load %arg2[%c0_175, %c4_176, %c0_177, %c2_178] : memref<1x8x4x18xf32, #tpu.memory_space<vmem>>, vector<1x1x4x16xf32>
    %191 = vector.shape_cast %190 : vector<1x1x4x16xf32> to vector<4x16xf32>
    %192 = vector.broadcast %11 : vector<4x1xf32> to vector<4x16xf32>
    %193 = arith.mulf %191, %192 : vector<4x16xf32>
    %194 = arith.addf %189, %193 : vector<4x16xf32>
    %c0_179 = arith.constant 0 : index
    %c5 = arith.constant 5 : index
    %c0_180 = arith.constant 0 : index
    %c0_181 = arith.constant 0 : index
    %195 = vector.load %arg2[%c0_179, %c5, %c0_180, %c0_181] : memref<1x8x4x18xf32, #tpu.memory_space<vmem>>, vector<1x1x4x16xf32>
    %196 = vector.shape_cast %195 : vector<1x1x4x16xf32> to vector<4x16xf32>
    %197 = vector.broadcast %13 : vector<4x1xf32> to vector<4x16xf32>
    %198 = arith.mulf %196, %197 : vector<4x16xf32>
    %199 = arith.addf %194, %198 : vector<4x16xf32>
    %c0_182 = arith.constant 0 : index
    %c5_183 = arith.constant 5 : index
    %c0_184 = arith.constant 0 : index
    %c1_185 = arith.constant 1 : index
    %200 = vector.load %arg2[%c0_182, %c5_183, %c0_184, %c1_185] : memref<1x8x4x18xf32, #tpu.memory_space<vmem>>, vector<1x1x4x16xf32>
    %201 = vector.shape_cast %200 : vector<1x1x4x16xf32> to vector<4x16xf32>
    %202 = vector.broadcast %15 : vector<4x1xf32> to vector<4x16xf32>
    %203 = arith.mulf %201, %202 : vector<4x16xf32>
    %204 = arith.addf %199, %203 : vector<4x16xf32>
    %c0_186 = arith.constant 0 : index
    %c5_187 = arith.constant 5 : index
    %c0_188 = arith.constant 0 : index
    %c2_189 = arith.constant 2 : index
    %205 = vector.load %arg2[%c0_186, %c5_187, %c0_188, %c2_189] : memref<1x8x4x18xf32, #tpu.memory_space<vmem>>, vector<1x1x4x16xf32>
    %206 = vector.shape_cast %205 : vector<1x1x4x16xf32> to vector<4x16xf32>
    %207 = vector.broadcast %17 : vector<4x1xf32> to vector<4x16xf32>
    %208 = arith.mulf %206, %207 : vector<4x16xf32>
    %209 = arith.addf %204, %208 : vector<4x16xf32>
    %210 = arith.truncf %209 : vector<4x16xf32> to vector<4x16xbf16>
    %cst_190 = arith.constant dense<0.000000e+00> : vector<8x16xf32>
    %211 = tpu.matmul %18, %210, %cst_190 {dimension_numbers = #tpu.dot_dimension_numbers<[1], [0], [0], [1], [0, 0, 1, 1], [], []>} : vector<8x4xbf16>, vector<4x16xbf16>, vector<8x16xf32> -> vector<8x16xf32>
    %c0_191 = arith.constant 0 : index
    %c0_192 = arith.constant 0 : index
    %c3_193 = arith.constant 3 : index
    %c0_194 = arith.constant 0 : index
    %212 = vector.load %arg6[%c0_191, %c0_192, %c3_193, %c0_194] : memref<1x8x8x16xf32, #tpu.memory_space<vmem>>, vector<1x8x1x16xf32>
    %213 = vector.shape_cast %212 : vector<1x8x1x16xf32> to vector<8x16xf32>
    %214 = vector.shape_cast %211 : vector<8x16xf32> to vector<1x8x1x16xf32>
    tpu.vector_store %arg6[%c0_191, %c0_192, %c3_193, %c0_194], %214 {strides = array<i32>} : memref<1x8x8x16xf32, #tpu.memory_space<vmem>>, vector<1x8x1x16xf32>,
    %c0_195 = arith.constant 0 : index
    %c4_196 = arith.constant 4 : index
    %c0_197 = arith.constant 0 : index
    %c0_198 = arith.constant 0 : index
    %215 = vector.load %arg2[%c0_195, %c4_196, %c0_197, %c0_198] : memref<1x8x4x18xf32, #tpu.memory_space<vmem>>, vector<1x1x4x16xf32>
    %216 = vector.shape_cast %215 : vector<1x1x4x16xf32> to vector<4x16xf32>
    %217 = vector.broadcast %1 : vector<4x1xf32> to vector<4x16xf32>
    %218 = arith.mulf %216, %217 : vector<4x16xf32>
    %c0_199 = arith.constant 0 : index
    %c4_200 = arith.constant 4 : index
    %c0_201 = arith.constant 0 : index
    %c1_202 = arith.constant 1 : index
    %219 = vector.load %arg2[%c0_199, %c4_200, %c0_201, %c1_202] : memref<1x8x4x18xf32, #tpu.memory_space<vmem>>, vector<1x1x4x16xf32>
    %220 = vector.shape_cast %219 : vector<1x1x4x16xf32> to vector<4x16xf32>
    %221 = vector.broadcast %3 : vector<4x1xf32> to vector<4x16xf32>
    %222 = arith.mulf %220, %221 : vector<4x16xf32>
    %223 = arith.addf %218, %222 : vector<4x16xf32>
    %c0_203 = arith.constant 0 : index
    %c4_204 = arith.constant 4 : index
    %c0_205 = arith.constant 0 : index
    %c2_206 = arith.constant 2 : index
    %224 = vector.load %arg2[%c0_203, %c4_204, %c0_205, %c2_206] : memref<1x8x4x18xf32, #tpu.memory_space<vmem>>, vector<1x1x4x16xf32>
    %225 = vector.shape_cast %224 : vector<1x1x4x16xf32> to vector<4x16xf32>
    %226 = vector.broadcast %5 : vector<4x1xf32> to vector<4x16xf32>
    %227 = arith.mulf %225, %226 : vector<4x16xf32>
    %228 = arith.addf %223, %227 : vector<4x16xf32>
    %c0_207 = arith.constant 0 : index
    %c5_208 = arith.constant 5 : index
    %c0_209 = arith.constant 0 : index
    %c0_210 = arith.constant 0 : index
    %229 = vector.load %arg2[%c0_207, %c5_208, %c0_209, %c0_210] : memref<1x8x4x18xf32, #tpu.memory_space<vmem>>, vector<1x1x4x16xf32>
    %230 = vector.shape_cast %229 : vector<1x1x4x16xf32> to vector<4x16xf32>
    %231 = vector.broadcast %7 : vector<4x1xf32> to vector<4x16xf32>
    %232 = arith.mulf %230, %231 : vector<4x16xf32>
    %233 = arith.addf %228, %232 : vector<4x16xf32>
    %c0_211 = arith.constant 0 : index
    %c5_212 = arith.constant 5 : index
    %c0_213 = arith.constant 0 : index
    %c1_214 = arith.constant 1 : index
    %234 = vector.load %arg2[%c0_211, %c5_212, %c0_213, %c1_214] : memref<1x8x4x18xf32, #tpu.memory_space<vmem>>, vector<1x1x4x16xf32>
    %235 = vector.shape_cast %234 : vector<1x1x4x16xf32> to vector<4x16xf32>
    %236 = vector.broadcast %9 : vector<4x1xf32> to vector<4x16xf32>
    %237 = arith.mulf %235, %236 : vector<4x16xf32>
    %238 = arith.addf %233, %237 : vector<4x16xf32>
    %c0_215 = arith.constant 0 : index
    %c5_216 = arith.constant 5 : index
    %c0_217 = arith.constant 0 : index
    %c2_218 = arith.constant 2 : index
    %239 = vector.load %arg2[%c0_215, %c5_216, %c0_217, %c2_218] : memref<1x8x4x18xf32, #tpu.memory_space<vmem>>, vector<1x1x4x16xf32>
    %240 = vector.shape_cast %239 : vector<1x1x4x16xf32> to vector<4x16xf32>
    %241 = vector.broadcast %11 : vector<4x1xf32> to vector<4x16xf32>
    %242 = arith.mulf %240, %241 : vector<4x16xf32>
    %243 = arith.addf %238, %242 : vector<4x16xf32>
    %c0_219 = arith.constant 0 : index
    %c6 = arith.constant 6 : index
    %c0_220 = arith.constant 0 : index
    %c0_221 = arith.constant 0 : index
    %244 = vector.load %arg2[%c0_219, %c6, %c0_220, %c0_221] : memref<1x8x4x18xf32, #tpu.memory_space<vmem>>, vector<1x1x4x16xf32>
    %245 = vector.shape_cast %244 : vector<1x1x4x16xf32> to vector<4x16xf32>
    %246 = vector.broadcast %13 : vector<4x1xf32> to vector<4x16xf32>
    %247 = arith.mulf %245, %246 : vector<4x16xf32>
    %248 = arith.addf %243, %247 : vector<4x16xf32>
    %c0_222 = arith.constant 0 : index
    %c6_223 = arith.constant 6 : index
    %c0_224 = arith.constant 0 : index
    %c1_225 = arith.constant 1 : index
    %249 = vector.load %arg2[%c0_222, %c6_223, %c0_224, %c1_225] : memref<1x8x4x18xf32, #tpu.memory_space<vmem>>, vector<1x1x4x16xf32>
    %250 = vector.shape_cast %249 : vector<1x1x4x16xf32> to vector<4x16xf32>
    %251 = vector.broadcast %15 : vector<4x1xf32> to vector<4x16xf32>
    %252 = arith.mulf %250, %251 : vector<4x16xf32>
    %253 = arith.addf %248, %252 : vector<4x16xf32>
    %c0_226 = arith.constant 0 : index
    %c6_227 = arith.constant 6 : index
    %c0_228 = arith.constant 0 : index
    %c2_229 = arith.constant 2 : index
    %254 = vector.load %arg2[%c0_226, %c6_227, %c0_228, %c2_229] : memref<1x8x4x18xf32, #tpu.memory_space<vmem>>, vector<1x1x4x16xf32>
    %255 = vector.shape_cast %254 : vector<1x1x4x16xf32> to vector<4x16xf32>
    %256 = vector.broadcast %17 : vector<4x1xf32> to vector<4x16xf32>
    %257 = arith.mulf %255, %256 : vector<4x16xf32>
    %258 = arith.addf %253, %257 : vector<4x16xf32>
    %259 = arith.truncf %258 : vector<4x16xf32> to vector<4x16xbf16>
    %cst_230 = arith.constant dense<0.000000e+00> : vector<8x16xf32>
    %260 = tpu.matmul %18, %259, %cst_230 {dimension_numbers = #tpu.dot_dimension_numbers<[1], [0], [0], [1], [0, 0, 1, 1], [], []>} : vector<8x4xbf16>, vector<4x16xbf16>, vector<8x16xf32> -> vector<8x16xf32>
    %c0_231 = arith.constant 0 : index
    %c0_232 = arith.constant 0 : index
    %c4_233 = arith.constant 4 : index
    %c0_234 = arith.constant 0 : index
    %261 = vector.load %arg6[%c0_231, %c0_232, %c4_233, %c0_234] : memref<1x8x8x16xf32, #tpu.memory_space<vmem>>, vector<1x8x1x16xf32>
    %262 = vector.shape_cast %261 : vector<1x8x1x16xf32> to vector<8x16xf32>
    %263 = vector.shape_cast %260 : vector<8x16xf32> to vector<1x8x1x16xf32>
    tpu.vector_store %arg6[%c0_231, %c0_232, %c4_233, %c0_234], %263 {strides = array<i32>} : memref<1x8x8x16xf32, #tpu.memory_space<vmem>>, vector<1x8x1x16xf32>,
    %c0_235 = arith.constant 0 : index
    %c5_236 = arith.constant 5 : index
    %c0_237 = arith.constant 0 : index
    %c0_238 = arith.constant 0 : index
    %264 = vector.load %arg2[%c0_235, %c5_236, %c0_237, %c0_238] : memref<1x8x4x18xf32, #tpu.memory_space<vmem>>, vector<1x1x4x16xf32>
    %265 = vector.shape_cast %264 : vector<1x1x4x16xf32> to vector<4x16xf32>
    %266 = vector.broadcast %1 : vector<4x1xf32> to vector<4x16xf32>
    %267 = arith.mulf %265, %266 : vector<4x16xf32>
    %c0_239 = arith.constant 0 : index
    %c5_240 = arith.constant 5 : index
    %c0_241 = arith.constant 0 : index
    %c1_242 = arith.constant 1 : index
    %268 = vector.load %arg2[%c0_239, %c5_240, %c0_241, %c1_242] : memref<1x8x4x18xf32, #tpu.memory_space<vmem>>, vector<1x1x4x16xf32>
    %269 = vector.shape_cast %268 : vector<1x1x4x16xf32> to vector<4x16xf32>
    %270 = vector.broadcast %3 : vector<4x1xf32> to vector<4x16xf32>
    %271 = arith.mulf %269, %270 : vector<4x16xf32>
    %272 = arith.addf %267, %271 : vector<4x16xf32>
    %c0_243 = arith.constant 0 : index
    %c5_244 = arith.constant 5 : index
    %c0_245 = arith.constant 0 : index
    %c2_246 = arith.constant 2 : index
    %273 = vector.load %arg2[%c0_243, %c5_244, %c0_245, %c2_246] : memref<1x8x4x18xf32, #tpu.memory_space<vmem>>, vector<1x1x4x16xf32>
    %274 = vector.shape_cast %273 : vector<1x1x4x16xf32> to vector<4x16xf32>
    %275 = vector.broadcast %5 : vector<4x1xf32> to vector<4x16xf32>
    %276 = arith.mulf %274, %275 : vector<4x16xf32>
    %277 = arith.addf %272, %276 : vector<4x16xf32>
    %c0_247 = arith.constant 0 : index
    %c6_248 = arith.constant 6 : index
    %c0_249 = arith.constant 0 : index
    %c0_250 = arith.constant 0 : index
    %278 = vector.load %arg2[%c0_247, %c6_248, %c0_249, %c0_250] : memref<1x8x4x18xf32, #tpu.memory_space<vmem>>, vector<1x1x4x16xf32>
    %279 = vector.shape_cast %278 : vector<1x1x4x16xf32> to vector<4x16xf32>
    %280 = vector.broadcast %7 : vector<4x1xf32> to vector<4x16xf32>
    %281 = arith.mulf %279, %280 : vector<4x16xf32>
    %282 = arith.addf %277, %281 : vector<4x16xf32>
    %c0_251 = arith.constant 0 : index
    %c6_252 = arith.constant 6 : index
    %c0_253 = arith.constant 0 : index
    %c1_254 = arith.constant 1 : index
    %283 = vector.load %arg2[%c0_251, %c6_252, %c0_253, %c1_254] : memref<1x8x4x18xf32, #tpu.memory_space<vmem>>, vector<1x1x4x16xf32>
    %284 = vector.shape_cast %283 : vector<1x1x4x16xf32> to vector<4x16xf32>
    %285 = vector.broadcast %9 : vector<4x1xf32> to vector<4x16xf32>
    %286 = arith.mulf %284, %285 : vector<4x16xf32>
    %287 = arith.addf %282, %286 : vector<4x16xf32>
    %c0_255 = arith.constant 0 : index
    %c6_256 = arith.constant 6 : index
    %c0_257 = arith.constant 0 : index
    %c2_258 = arith.constant 2 : index
    %288 = vector.load %arg2[%c0_255, %c6_256, %c0_257, %c2_258] : memref<1x8x4x18xf32, #tpu.memory_space<vmem>>, vector<1x1x4x16xf32>
    %289 = vector.shape_cast %288 : vector<1x1x4x16xf32> to vector<4x16xf32>
    %290 = vector.broadcast %11 : vector<4x1xf32> to vector<4x16xf32>
    %291 = arith.mulf %289, %290 : vector<4x16xf32>
    %292 = arith.addf %287, %291 : vector<4x16xf32>
    %c0_259 = arith.constant 0 : index
    %c7 = arith.constant 7 : index
    %c0_260 = arith.constant 0 : index
    %c0_261 = arith.constant 0 : index
    %293 = vector.load %arg2[%c0_259, %c7, %c0_260, %c0_261] : memref<1x8x4x18xf32, #tpu.memory_space<vmem>>, vector<1x1x4x16xf32>
    %294 = vector.shape_cast %293 : vector<1x1x4x16xf32> to vector<4x16xf32>
    %295 = vector.broadcast %13 : vector<4x1xf32> to vector<4x16xf32>
    %296 = arith.mulf %294, %295 : vector<4x16xf32>
    %297 = arith.addf %292, %296 : vector<4x16xf32>
    %c0_262 = arith.constant 0 : index
    %c7_263 = arith.constant 7 : index
    %c0_264 = arith.constant 0 : index
    %c1_265 = arith.constant 1 : index
    %298 = vector.load %arg2[%c0_262, %c7_263, %c0_264, %c1_265] : memref<1x8x4x18xf32, #tpu.memory_space<vmem>>, vector<1x1x4x16xf32>
    %299 = vector.shape_cast %298 : vector<1x1x4x16xf32> to vector<4x16xf32>
    %300 = vector.broadcast %15 : vector<4x1xf32> to vector<4x16xf32>
    %301 = arith.mulf %299, %300 : vector<4x16xf32>
    %302 = arith.addf %297, %301 : vector<4x16xf32>
    %c0_266 = arith.constant 0 : index
    %c7_267 = arith.constant 7 : index
    %c0_268 = arith.constant 0 : index
    %c2_269 = arith.constant 2 : index
    %303 = vector.load %arg2[%c0_266, %c7_267, %c0_268, %c2_269] : memref<1x8x4x18xf32, #tpu.memory_space<vmem>>, vector<1x1x4x16xf32>
    %304 = vector.shape_cast %303 : vector<1x1x4x16xf32> to vector<4x16xf32>
    %305 = vector.broadcast %17 : vector<4x1xf32> to vector<4x16xf32>
    %306 = arith.mulf %304, %305 : vector<4x16xf32>
    %307 = arith.addf %302, %306 : vector<4x16xf32>
    %308 = arith.truncf %307 : vector<4x16xf32> to vector<4x16xbf16>
    %cst_270 = arith.constant dense<0.000000e+00> : vector<8x16xf32>
    %309 = tpu.matmul %18, %308, %cst_270 {dimension_numbers = #tpu.dot_dimension_numbers<[1], [0], [0], [1], [0, 0, 1, 1], [], []>} : vector<8x4xbf16>, vector<4x16xbf16>, vector<8x16xf32> -> vector<8x16xf32>
    %c0_271 = arith.constant 0 : index
    %c0_272 = arith.constant 0 : index
    %c5_273 = arith.constant 5 : index
    %c0_274 = arith.constant 0 : index
    %310 = vector.load %arg6[%c0_271, %c0_272, %c5_273, %c0_274] : memref<1x8x8x16xf32, #tpu.memory_space<vmem>>, vector<1x8x1x16xf32>
    %311 = vector.shape_cast %310 : vector<1x8x1x16xf32> to vector<8x16xf32>
    %312 = vector.shape_cast %309 : vector<8x16xf32> to vector<1x8x1x16xf32>
    tpu.vector_store %arg6[%c0_271, %c0_272, %c5_273, %c0_274], %312 {strides = array<i32>} : memref<1x8x8x16xf32, #tpu.memory_space<vmem>>, vector<1x8x1x16xf32>,
    %c0_275 = arith.constant 0 : index
    %c6_276 = arith.constant 6 : index
    %c0_277 = arith.constant 0 : index
    %c0_278 = arith.constant 0 : index
    %313 = vector.load %arg2[%c0_275, %c6_276, %c0_277, %c0_278] : memref<1x8x4x18xf32, #tpu.memory_space<vmem>>, vector<1x1x4x16xf32>
    %314 = vector.shape_cast %313 : vector<1x1x4x16xf32> to vector<4x16xf32>
    %315 = vector.broadcast %1 : vector<4x1xf32> to vector<4x16xf32>
    %316 = arith.mulf %314, %315 : vector<4x16xf32>
    %c0_279 = arith.constant 0 : index
    %c6_280 = arith.constant 6 : index
    %c0_281 = arith.constant 0 : index
    %c1_282 = arith.constant 1 : index
    %317 = vector.load %arg2[%c0_279, %c6_280, %c0_281, %c1_282] : memref<1x8x4x18xf32, #tpu.memory_space<vmem>>, vector<1x1x4x16xf32>
    %318 = vector.shape_cast %317 : vector<1x1x4x16xf32> to vector<4x16xf32>
    %319 = vector.broadcast %3 : vector<4x1xf32> to vector<4x16xf32>
    %320 = arith.mulf %318, %319 : vector<4x16xf32>
    %321 = arith.addf %316, %320 : vector<4x16xf32>
    %c0_283 = arith.constant 0 : index
    %c6_284 = arith.constant 6 : index
    %c0_285 = arith.constant 0 : index
    %c2_286 = arith.constant 2 : index
    %322 = vector.load %arg2[%c0_283, %c6_284, %c0_285, %c2_286] : memref<1x8x4x18xf32, #tpu.memory_space<vmem>>, vector<1x1x4x16xf32>
    %323 = vector.shape_cast %322 : vector<1x1x4x16xf32> to vector<4x16xf32>
    %324 = vector.broadcast %5 : vector<4x1xf32> to vector<4x16xf32>
    %325 = arith.mulf %323, %324 : vector<4x16xf32>
    %326 = arith.addf %321, %325 : vector<4x16xf32>
    %c0_287 = arith.constant 0 : index
    %c7_288 = arith.constant 7 : index
    %c0_289 = arith.constant 0 : index
    %c0_290 = arith.constant 0 : index
    %327 = vector.load %arg2[%c0_287, %c7_288, %c0_289, %c0_290] : memref<1x8x4x18xf32, #tpu.memory_space<vmem>>, vector<1x1x4x16xf32>
    %328 = vector.shape_cast %327 : vector<1x1x4x16xf32> to vector<4x16xf32>
    %329 = vector.broadcast %7 : vector<4x1xf32> to vector<4x16xf32>
    %330 = arith.mulf %328, %329 : vector<4x16xf32>
    %331 = arith.addf %326, %330 : vector<4x16xf32>
    %c0_291 = arith.constant 0 : index
    %c7_292 = arith.constant 7 : index
    %c0_293 = arith.constant 0 : index
    %c1_294 = arith.constant 1 : index
    %332 = vector.load %arg2[%c0_291, %c7_292, %c0_293, %c1_294] : memref<1x8x4x18xf32, #tpu.memory_space<vmem>>, vector<1x1x4x16xf32>
    %333 = vector.shape_cast %332 : vector<1x1x4x16xf32> to vector<4x16xf32>
    %334 = vector.broadcast %9 : vector<4x1xf32> to vector<4x16xf32>
    %335 = arith.mulf %333, %334 : vector<4x16xf32>
    %336 = arith.addf %331, %335 : vector<4x16xf32>
    %c0_295 = arith.constant 0 : index
    %c7_296 = arith.constant 7 : index
    %c0_297 = arith.constant 0 : index
    %c2_298 = arith.constant 2 : index
    %337 = vector.load %arg2[%c0_295, %c7_296, %c0_297, %c2_298] : memref<1x8x4x18xf32, #tpu.memory_space<vmem>>, vector<1x1x4x16xf32>
    %338 = vector.shape_cast %337 : vector<1x1x4x16xf32> to vector<4x16xf32>
    %339 = vector.broadcast %11 : vector<4x1xf32> to vector<4x16xf32>
    %340 = arith.mulf %338, %339 : vector<4x16xf32>
    %341 = arith.addf %336, %340 : vector<4x16xf32>
    %c0_299 = arith.constant 0 : index
    %c0_300 = arith.constant 0 : index
    %c0_301 = arith.constant 0 : index
    %c0_302 = arith.constant 0 : index
    %342 = vector.load %arg3[%c0_299, %c0_300, %c0_301, %c0_302] : memref<1x2x4x18xf32, #tpu.memory_space<vmem>>, vector<1x1x4x16xf32>
    %343 = vector.shape_cast %342 : vector<1x1x4x16xf32> to vector<4x16xf32>
    %344 = vector.broadcast %13 : vector<4x1xf32> to vector<4x16xf32>
    %345 = arith.mulf %343, %344 : vector<4x16xf32>
    %346 = arith.addf %341, %345 : vector<4x16xf32>
    %c0_303 = arith.constant 0 : index
    %c0_304 = arith.constant 0 : index
    %c0_305 = arith.constant 0 : index
    %c1_306 = arith.constant 1 : index
    %347 = vector.load %arg3[%c0_303, %c0_304, %c0_305, %c1_306] : memref<1x2x4x18xf32, #tpu.memory_space<vmem>>, vector<1x1x4x16xf32>
    %348 = vector.shape_cast %347 : vector<1x1x4x16xf32> to vector<4x16xf32>
    %349 = vector.broadcast %15 : vector<4x1xf32> to vector<4x16xf32>
    %350 = arith.mulf %348, %349 : vector<4x16xf32>
    %351 = arith.addf %346, %350 : vector<4x16xf32>
    %c0_307 = arith.constant 0 : index
    %c0_308 = arith.constant 0 : index
    %c0_309 = arith.constant 0 : index
    %c2_310 = arith.constant 2 : index
    %352 = vector.load %arg3[%c0_307, %c0_308, %c0_309, %c2_310] : memref<1x2x4x18xf32, #tpu.memory_space<vmem>>, vector<1x1x4x16xf32>
    %353 = vector.shape_cast %352 : vector<1x1x4x16xf32> to vector<4x16xf32>
    %354 = vector.broadcast %17 : vector<4x1xf32> to vector<4x16xf32>
    %355 = arith.mulf %353, %354 : vector<4x16xf32>
    %356 = arith.addf %351, %355 : vector<4x16xf32>
    %357 = arith.truncf %356 : vector<4x16xf32> to vector<4x16xbf16>
    %cst_311 = arith.constant dense<0.000000e+00> : vector<8x16xf32>
    %358 = tpu.matmul %18, %357, %cst_311 {dimension_numbers = #tpu.dot_dimension_numbers<[1], [0], [0], [1], [0, 0, 1, 1], [], []>} : vector<8x4xbf16>, vector<4x16xbf16>, vector<8x16xf32> -> vector<8x16xf32>
    %c0_312 = arith.constant 0 : index
    %c0_313 = arith.constant 0 : index
    %c6_314 = arith.constant 6 : index
    %c0_315 = arith.constant 0 : index
    %359 = vector.load %arg6[%c0_312, %c0_313, %c6_314, %c0_315] : memref<1x8x8x16xf32, #tpu.memory_space<vmem>>, vector<1x8x1x16xf32>
    %360 = vector.shape_cast %359 : vector<1x8x1x16xf32> to vector<8x16xf32>
    %361 = vector.shape_cast %358 : vector<8x16xf32> to vector<1x8x1x16xf32>
    tpu.vector_store %arg6[%c0_312, %c0_313, %c6_314, %c0_315], %361 {strides = array<i32>} : memref<1x8x8x16xf32, #tpu.memory_space<vmem>>, vector<1x8x1x16xf32>,
    %c0_316 = arith.constant 0 : index
    %c7_317 = arith.constant 7 : index
    %c0_318 = arith.constant 0 : index
    %c0_319 = arith.constant 0 : index
    %362 = vector.load %arg2[%c0_316, %c7_317, %c0_318, %c0_319] : memref<1x8x4x18xf32, #tpu.memory_space<vmem>>, vector<1x1x4x16xf32>
    %363 = vector.shape_cast %362 : vector<1x1x4x16xf32> to vector<4x16xf32>
    %364 = vector.broadcast %1 : vector<4x1xf32> to vector<4x16xf32>
    %365 = arith.mulf %363, %364 : vector<4x16xf32>
    %c0_320 = arith.constant 0 : index
    %c7_321 = arith.constant 7 : index
    %c0_322 = arith.constant 0 : index
    %c1_323 = arith.constant 1 : index
    %366 = vector.load %arg2[%c0_320, %c7_321, %c0_322, %c1_323] : memref<1x8x4x18xf32, #tpu.memory_space<vmem>>, vector<1x1x4x16xf32>
    %367 = vector.shape_cast %366 : vector<1x1x4x16xf32> to vector<4x16xf32>
    %368 = vector.broadcast %3 : vector<4x1xf32> to vector<4x16xf32>
    %369 = arith.mulf %367, %368 : vector<4x16xf32>
    %370 = arith.addf %365, %369 : vector<4x16xf32>
    %c0_324 = arith.constant 0 : index
    %c7_325 = arith.constant 7 : index
    %c0_326 = arith.constant 0 : index
    %c2_327 = arith.constant 2 : index
    %371 = vector.load %arg2[%c0_324, %c7_325, %c0_326, %c2_327] : memref<1x8x4x18xf32, #tpu.memory_space<vmem>>, vector<1x1x4x16xf32>
    %372 = vector.shape_cast %371 : vector<1x1x4x16xf32> to vector<4x16xf32>
    %373 = vector.broadcast %5 : vector<4x1xf32> to vector<4x16xf32>
    %374 = arith.mulf %372, %373 : vector<4x16xf32>
    %375 = arith.addf %370, %374 : vector<4x16xf32>
    %c0_328 = arith.constant 0 : index
    %c0_329 = arith.constant 0 : index
    %c0_330 = arith.constant 0 : index
    %c0_331 = arith.constant 0 : index
    %376 = vector.load %arg3[%c0_328, %c0_329, %c0_330, %c0_331] : memref<1x2x4x18xf32, #tpu.memory_space<vmem>>, vector<1x1x4x16xf32>
    %377 = vector.shape_cast %376 : vector<1x1x4x16xf32> to vector<4x16xf32>
    %378 = vector.broadcast %7 : vector<4x1xf32> to vector<4x16xf32>
    %379 = arith.mulf %377, %378 : vector<4x16xf32>
    %380 = arith.addf %375, %379 : vector<4x16xf32>
    %c0_332 = arith.constant 0 : index
    %c0_333 = arith.constant 0 : index
    %c0_334 = arith.constant 0 : index
    %c1_335 = arith.constant 1 : index
    %381 = vector.load %arg3[%c0_332, %c0_333, %c0_334, %c1_335] : memref<1x2x4x18xf32, #tpu.memory_space<vmem>>, vector<1x1x4x16xf32>
    %382 = vector.shape_cast %381 : vector<1x1x4x16xf32> to vector<4x16xf32>
    %383 = vector.broadcast %9 : vector<4x1xf32> to vector<4x16xf32>
    %384 = arith.mulf %382, %383 : vector<4x16xf32>
    %385 = arith.addf %380, %384 : vector<4x16xf32>
    %c0_336 = arith.constant 0 : index
    %c0_337 = arith.constant 0 : index
    %c0_338 = arith.constant 0 : index
    %c2_339 = arith.constant 2 : index
    %386 = vector.load %arg3[%c0_336, %c0_337, %c0_338, %c2_339] : memref<1x2x4x18xf32, #tpu.memory_space<vmem>>, vector<1x1x4x16xf32>
    %387 = vector.shape_cast %386 : vector<1x1x4x16xf32> to vector<4x16xf32>
    %388 = vector.broadcast %11 : vector<4x1xf32> to vector<4x16xf32>
    %389 = arith.mulf %387, %388 : vector<4x16xf32>
    %390 = arith.addf %385, %389 : vector<4x16xf32>
    %c0_340 = arith.constant 0 : index
    %c1_341 = arith.constant 1 : index
    %c0_342 = arith.constant 0 : index
    %c0_343 = arith.constant 0 : index
    %391 = vector.load %arg3[%c0_340, %c1_341, %c0_342, %c0_343] : memref<1x2x4x18xf32, #tpu.memory_space<vmem>>, vector<1x1x4x16xf32>
    %392 = vector.shape_cast %391 : vector<1x1x4x16xf32> to vector<4x16xf32>
    %393 = vector.broadcast %13 : vector<4x1xf32> to vector<4x16xf32>
    %394 = arith.mulf %392, %393 : vector<4x16xf32>
    %395 = arith.addf %390, %394 : vector<4x16xf32>
    %c0_344 = arith.constant 0 : index
    %c1_345 = arith.constant 1 : index
    %c0_346 = arith.constant 0 : index
    %c1_347 = arith.constant 1 : index
    %396 = vector.load %arg3[%c0_344, %c1_345, %c0_346, %c1_347] : memref<1x2x4x18xf32, #tpu.memory_space<vmem>>, vector<1x1x4x16xf32>
    %397 = vector.shape_cast %396 : vector<1x1x4x16xf32> to vector<4x16xf32>
    %398 = vector.broadcast %15 : vector<4x1xf32> to vector<4x16xf32>
    %399 = arith.mulf %397, %398 : vector<4x16xf32>
    %400 = arith.addf %395, %399 : vector<4x16xf32>
    %c0_348 = arith.constant 0 : index
    %c1_349 = arith.constant 1 : index
    %c0_350 = arith.constant 0 : index
    %c2_351 = arith.constant 2 : index
    %401 = vector.load %arg3[%c0_348, %c1_349, %c0_350, %c2_351] : memref<1x2x4x18xf32, #tpu.memory_space<vmem>>, vector<1x1x4x16xf32>
    %402 = vector.shape_cast %401 : vector<1x1x4x16xf32> to vector<4x16xf32>
    %403 = vector.broadcast %17 : vector<4x1xf32> to vector<4x16xf32>
    %404 = arith.mulf %402, %403 : vector<4x16xf32>
    %405 = arith.addf %400, %404 : vector<4x16xf32>
    %406 = arith.truncf %405 : vector<4x16xf32> to vector<4x16xbf16>
    %cst_352 = arith.constant dense<0.000000e+00> : vector<8x16xf32>
    %407 = tpu.matmul %18, %406, %cst_352 {dimension_numbers = #tpu.dot_dimension_numbers<[1], [0], [0], [1], [0, 0, 1, 1], [], []>} : vector<8x4xbf16>, vector<4x16xbf16>, vector<8x16xf32> -> vector<8x16xf32>
    %c0_353 = arith.constant 0 : index
    %c0_354 = arith.constant 0 : index
    %c7_355 = arith.constant 7 : index
    %c0_356 = arith.constant 0 : index
    %408 = vector.load %arg6[%c0_353, %c0_354, %c7_355, %c0_356] : memref<1x8x8x16xf32, #tpu.memory_space<vmem>>, vector<1x8x1x16xf32>
    %409 = vector.shape_cast %408 : vector<1x8x1x16xf32> to vector<8x16xf32>
    %410 = vector.shape_cast %407 : vector<8x16xf32> to vector<1x8x1x16xf32>
    tpu.vector_store %arg6[%c0_353, %c0_354, %c7_355, %c0_356], %410 {strides = array<i32>} : memref<1x8x8x16xf32, #tpu.memory_space<vmem>>, vector<1x8x1x16xf32>,
    return
  }
  func.func @transform_0(%arg0: i32, %arg1: i32) -> (i32, i32, i32, i32) {
    %c0_i32 = arith.constant 0 : i32
    %c0_i32_0 = arith.constant 0 : i32
    %c0_i32_1 = arith.constant 0 : i32
    return %arg0, %arg1, %c0_i32, %c0_i32_0 : i32, i32, i32, i32
  }
  func.func @transform_1(%arg0: i32, %arg1: i32) -> (i32, i32, i32, i32) {
    %c1_i32 = arith.constant 1 : i32
    %0 = arith.addi %arg1, %c1_i32 : i32
    %c4_i32 = arith.constant 4 : i32
    %1 = arith.muli %0, %c4_i32 : i32
    %c0_i32 = arith.constant 0 : i32
    %c0_i32_0 = arith.constant 0 : i32
    %c0_i32_1 = arith.constant 0 : i32
    return %arg0, %1, %c0_i32, %c0_i32_0 : i32, i32, i32, i32
  }
  func.func @transform_2(%arg0: i32, %arg1: i32) -> (i32, i32, i32, i32) {
    %c0_i32 = arith.constant 0 : i32
    %c0_i32_0 = arith.constant 0 : i32
    %c0_i32_1 = arith.constant 0 : i32
    %c0_i32_2 = arith.constant 0 : i32
    %c0_i32_3 = arith.constant 0 : i32
    return %c0_i32, %c0_i32_0, %c0_i32_1, %c0_i32_2 : i32, i32, i32, i32
  }
  func.func @transform_3(%arg0: i32, %arg1: i32) -> (i32, i32) {
    %c0_i32 = arith.constant 0 : i32
    %c0_i32_0 = arith.constant 0 : i32
    %c0_i32_1 = arith.constant 0 : i32
    return %c0_i32, %c0_i32_0 : i32, i32
  }
  func.func @transform_4(%arg0: i32, %arg1: i32) -> (i32, i32, i32, i32) {
    %c0_i32 = arith.constant 0 : i32
    %c0_i32_0 = arith.constant 0 : i32
    %c0_i32_1 = arith.constant 0 : i32
    return %arg0, %c0_i32, %arg1, %c0_i32_0 : i32, i32, i32, i32
  }
}

</mosaic_0001>

<llo_original>
// kernel: tpu_custom_call.1
$region0: #{tpu_custom_call.1}
  #allocation0 [shape = 'u32[]', space=smem, size = 0x4, offset = 0x4, fixed_abs, tag = 'smem constant byte address 0x4 - core index']
  #allocation1 [shape = 'u32[144,128]{1,0:T(1,128)}', space=vmem, size = 0x12000, scoped, tag = 'internal scratch']
  %s0 = inlined_call_operand.hbm [shape: f32[2,18,4,18], index: 0, kind: input, shape index: {}]
  %s1 = inlined_call_operand.hbm [shape: f32[2,18,4,18], index: 1, kind: input, shape index: {}]
  %s2 = inlined_call_operand.vmem [shape: f32[3,3,4,1], index: 2, kind: input, shape index: {}]
  %s3 = inlined_call_operand.vmem [shape: bf16[8,4], index: 3, kind: input, shape index: {}]
  %s4 = inlined_call_operand.hbm [shape: f32[2,8,16,16], index: 4, kind: output, shape index: {}]
  %s5 = sld [smem:[#allocation0]]
  $region57: #{tpu_custom_call.1} parent=0
    _
  %s7 = ssub.s32 1, %s5
  %s8 = scalar_select 0, %s7, %s5
  $region1: #{tpu_custom_call.1} parent=0
    #allocation2 [shape = 'u8[32768]{0}', space=vmem, size = 0x8000, scoped, tag = 'input window, operand 0']
    #allocation3 [shape = 's32[2]{0}', space=sflag, size = 0x8, scoped, tag = 'scoped memory for tpu_custom_call.1']
    #allocation4 [shape = 's32[2]{0}', space=sflag, size = 0x8, scoped, tag = 'scoped memory for tpu_custom_call.1']
    #allocation5 [shape = 'u8[8192]{0}', space=vmem, size = 0x2000, scoped, tag = 'input window, operand 1']
    #allocation6 [shape = 's32[2]{0}', space=sflag, size = 0x8, scoped, tag = 'scoped memory for tpu_custom_call.1']
    #allocation7 [shape = 'u8[65536]{0}', space=vmem, size = 0x10000, scoped, tag = 'output window, operand 0']
    %9 = vsyncpa [#allocation3], 0
    %s10 = scalar_lea.sflag [#allocation3], 1
    %11 = vsyncpa %s10, 0
    %12 = vsyncpa [#allocation6], 0
    %s13 = scalar_lea.sflag [#allocation6], 1
    %14 = vsyncpa %s13, 0
    %15 = vsyncpa [#allocation4], 0
    %s16 = scalar_lea.sflag [#allocation4], 1
    %17 = vsyncpa %s16, 0
    loop: start=0, step=1, limit=6
    $region2: #{tpu_custom_call.1} parent=1 // loop_pre_header
      _
    $region3: #{tpu_custom_call.1} parent=1 // loop_header
      %s19 = sphi 0, %s23
      %p20 = scmp.ge.s32.totalorder %s19, 6
      %s26 = sphi 0, %s38
      %s27 = sphi 0, %s34
      %s28 = sphi 0, %s26
      %s29 = sphi 0, %s27
      %s30 = sphi 0, %s28
      %s31 = sphi 0, %s29
      %s43 = sphi 0, %s45
      %s46 = sphi 0, %s43
      %s47 = sphi 0, %s46
      %s63 = sphi 0, %s47
      %s75 = sphi 0, %s77
      %s78 = sphi 0, %s75
      %s79 = sphi 0, %s78
      %s95 = sphi 0, %s79
      %s99 = sphi 0, %s99
      %s101 = sphi 0, %s99
      %s102 = sphi 0, %s101
      %s116 = sphi 0, %s102
      %s120 = sphi 0, %s120
      %s122 = sphi 0, %s120
      %s123 = sphi 0, %s122
      %s137 = sphi 0, %s123
      %s145 = sphi 0, %s147
      %s148 = sphi 0, %s145
      %s149 = sphi 0, %s148
      %s165 = sphi 0, %s149
    $region4: #{tpu_custom_call.1} parent=1 // loop_header_branch
      %22 = sbr.rel (%p20) target = $region8
    $region5: #{tpu_custom_call.1} parent=1 // loop_body
      %s24 = ssub.s32 %s19, 1
      %s25 = ssub.s32 %s19, 2
      %s32 = sadd.s32 1, %s27
      %p33 = scmp.ge.s32.totalorder %s32, 2
      %s34 = scalar_select %p33, 0, %s32
      %s35 = sadd.s32 1, %s26
      %s36 = scalar_select %p33, %s35, %s26
      %p37 = scmp.ge.s32.totalorder %s36, 2
      %s38 = scalar_select %p37, 0, %s36
      %s39 = ssub.s32 %s26, %s38
      %s40 = ssub.s32 %s27, %s34
      %s41 = sor.u32 %s39, %s40
      %p42 = scmp.eq.s32.totalorder %s41, 0
      %s44 = sadd.s32 %s43, 1
      %s45 = scalar_select %p42, %s43, %s44
      %p48 = pneg %p42
      %p49 = scmp.eq.s32.totalorder %s19, 3
      %p50 = por %p48, %p49
      %p51 = scmp.ne.s32.totalorder %s43, %s46
      %p52 = scmp.eq.s32.totalorder %s19, 0
      %p53 = por %p51, %p52
      %p54 = scmp.ne.s32.totalorder %s43, %s46
      %p55 = scmp.eq.s32.totalorder %s24, 3
      %p56 = por %p54, %p55
      %p57 = scmp.ne.s32.totalorder %s46, %s47
      %p58 = scmp.eq.s32.totalorder %s24, 0
      %p59 = por %p57, %p58
      %p60 = scmp.ne.s32.totalorder %s46, %s47
      %p61 = scmp.eq.s32.totalorder %s25, 3
      %p62 = por %p60, %p61
      %p64 = scmp.ne.s32.totalorder %s47, %s63
      %p65 = scmp.eq.s32.totalorder %s25, 0
      %p66 = por %p64, %p65
      %s67 = sadd.s32 %s27, 1
      %s68 = smul.u32 %s67, 4
      %s69 = sadd.s32 %s34, 1
      %s70 = smul.u32 %s69, 4
      %s71 = ssub.s32 %s26, %s38
      %s72 = ssub.s32 %s68, %s70
      %s73 = sor.u32 %s71, %s72
      %p74 = scmp.eq.s32.totalorder %s73, 0
      %s76 = sadd.s32 %s75, 1
      %s77 = scalar_select %p74, %s75, %s76
      %p80 = pneg %p74
      %p81 = scmp.eq.s32.totalorder %s19, 3
      %p82 = por %p80, %p81
      %p83 = scmp.ne.s32.totalorder %s75, %s78
      %p84 = scmp.eq.s32.totalorder %s19, 0
      %p85 = por %p83, %p84
      %p86 = scmp.ne.s32.totalorder %s75, %s78
      %p87 = scmp.eq.s32.totalorder %s24, 3
      %p88 = por %p86, %p87
      %p89 = scmp.ne.s32.totalorder %s78, %s79
      %p90 = scmp.eq.s32.totalorder %s24, 0
      %p91 = por %p89, %p90
      %p92 = scmp.ne.s32.totalorder %s78, %s79
      %p93 = scmp.eq.s32.totalorder %s25, 3
      %p94 = por %p92, %p93
      %p96 = scmp.ne.s32.totalorder %s79, %s95
      %p97 = scmp.eq.s32.totalorder %s25, 0
      %p98 = por %p96, %p97
      %s100 = sadd.s32 %s99, 1
      %p103 = scmp.eq.s32.totalorder %s19, 3
      %p104 = scmp.ne.s32.totalorder %s99, %s101
      %p105 = scmp.eq.s32.totalorder %s19, 0
      %p106 = por %p104, %p105
      %p107 = scmp.ne.s32.totalorder %s99, %s101
      %p108 = scmp.eq.s32.totalorder %s24, 3
      %p109 = por %p107, %p108
      %p110 = scmp.ne.s32.totalorder %s101, %s102
      %p111 = scmp.eq.s32.totalorder %s24, 0
      %p112 = por %p110, %p111
      %p113 = scmp.ne.s32.totalorder %s101, %s102
      %p114 = scmp.eq.s32.totalorder %s25, 3
      %p115 = por %p113, %p114
      %p117 = scmp.ne.s32.totalorder %s102, %s116
      %p118 = scmp.eq.s32.totalorder %s25, 0
      %p119 = por %p117, %p118
      %s121 = sadd.s32 %s120, 1
      %p124 = scmp.eq.s32.totalorder %s19, 3
      %p125 = scmp.ne.s32.totalorder %s120, %s122
      %p126 = scmp.eq.s32.totalorder %s19, 0
      %p127 = por %p125, %p126
      %p128 = scmp.ne.s32.totalorder %s120, %s122
      %p129 = scmp.eq.s32.totalorder %s24, 3
      %p130 = por %p128, %p129
      %p131 = scmp.ne.s32.totalorder %s122, %s123
      %p132 = scmp.eq.s32.totalorder %s24, 0
      %p133 = por %p131, %p132
      %p134 = scmp.ne.s32.totalorder %s122, %s123
      %p135 = scmp.eq.s32.totalorder %s25, 3
      %p136 = por %p134, %p135
      %p138 = scmp.ne.s32.totalorder %s123, %s137
      %p139 = scmp.eq.s32.totalorder %s25, 0
      %p140 = por %p138, %p139
      %s141 = ssub.s32 %s26, %s38
      %s142 = ssub.s32 %s27, %s34
      %s143 = sor.u32 %s141, %s142
      %p144 = scmp.eq.s32.totalorder %s143, 0
      %s146 = sadd.s32 %s145, 1
      %s147 = scalar_select %p144, %s145, %s146
      %p150 = pneg %p144
      %p151 = scmp.eq.s32.totalorder %s19, 3
      %p152 = por %p150, %p151
      %p153 = scmp.ne.s32.totalorder %s145, %s148
      %p154 = scmp.eq.s32.totalorder %s19, 0
      %p155 = por %p153, %p154
      %p156 = scmp.ne.s32.totalorder %s145, %s148
      %p157 = scmp.eq.s32.totalorder %s24, 3
      %p158 = por %p156, %p157
      %p159 = scmp.ne.s32.totalorder %s148, %s149
      %p160 = scmp.eq.s32.totalorder %s24, 0
      %p161 = por %p159, %p160
      %p162 = scmp.ne.s32.totalorder %s148, %s149
      %p163 = scmp.eq.s32.totalorder %s25, 3
      %p164 = por %p162, %p163
      %p166 = scmp.ne.s32.totalorder %s149, %s165
      %p167 = scmp.eq.s32.totalorder %s25, 0
      %p168 = por %p166, %p167
      %p169 = scmp.le.s32.totalorder 1, %s19
      %p170 = scmp.lt.s32.totalorder %s19, 5
      %p171 = pnand %p169, %p170
      %p172 = pneg %p171
      // Predicated region
      $region9: #{tpu_custom_call.1} parent=5 // pred_check
        _
      $region10: #{tpu_custom_call.1} parent=5 // pred_check_branch
        %174 = sbr.rel (%p171) target = $region12
      $region11: #{tpu_custom_call.1} parent=5 // pred_region
        %s175 = ssub.s32 %s19, 1
        // Predicated region
        $region13: #{tpu_custom_call.1} parent=11 // pred_check
          %p176 = pneg %p112
        $region14: #{tpu_custom_call.1} parent=11 // pred_check_branch
          %178 = sbr.rel (%p176) target = $region16
        $region15: #{tpu_custom_call.1} parent=11 // pred_region
          _
        $region16: #{tpu_custom_call.1} parent=11 // pred_fallthru
          _
        // Predicated region
        $region17: #{tpu_custom_call.1} parent=11 // pred_check
          %p179 = pneg %p133
        $region18: #{tpu_custom_call.1} parent=11 // pred_check_branch
          %181 = sbr.rel (%p179) target = $region20
        $region19: #{tpu_custom_call.1} parent=11 // pred_region
          _
        $region20: #{tpu_custom_call.1} parent=11 // pred_fallthru
          _
      $region12: #{tpu_custom_call.1} parent=5 // pred_fallthru
        _
      %p182 = scmp.lt.s32.totalorder %s19, 4
      // Predicated region
      $region21: #{tpu_custom_call.1} parent=5 // pred_check
        %p183 = pneg %p182
      $region22: #{tpu_custom_call.1} parent=5 // pred_check_branch
        %185 = sbr.rel (%p183) target = $region24
      $region23: #{tpu_custom_call.1} parent=5 // pred_region
        // Predicated region
        $region25: #{tpu_custom_call.1} parent=23 // pred_check
          %p186 = pneg %p53
        $region26: #{tpu_custom_call.1} parent=23 // pred_check_branch
          %188 = sbr.rel (%p186) target = $region28
        $region27: #{tpu_custom_call.1} parent=23 // pred_region
          %s189 = sand.u32 %s43, 1
          %s190 = scalar_lea.sflag [#allocation3], %s189
          %s191 = sand.u32 %s43, 1
          %s192 = smul.addr %s191, 32
          %s193 = scalar_lea.vmem [#allocation2], %s192
          %s194 = smul.u32 8, %s27
          %s195 = ssub.s32 18, %s194
          %p196 = scmp.lt.s32.totalorder %s195, 8
          %s197 = scalar_select %p196, %s195, 8
          %s198 = smul.u32 64, %s197
          %s200 = ssub.s32 512, %s198
          %201 = vsyncadd %s190, %s200
          %p202 = scmp.ne.s32.totalorder 0, %s198
          %s203 = smul.addr %s26, 18
          %s204 = sadd.s32 %s194, %s203
          %s205 = smul.addr %s204, 64
          %s206 = scalar_lea.hbm %s0, %s205
          %s207 = smul.u32 4, %s197
          %s208 = sshll.u32 %s193, 4
          %s209 = int_to_ptr.vmem [resolvable:$true] %s208
          %s210 = sshll.u32 %s207, 4
          %214 = dma.hbm_to_vmem [thread:$0]  (%p202), %s206, %s210, %s209, %s190, 64, 64, 4
        $region28: #{tpu_custom_call.1} parent=23 // pred_fallthru
          _
        // Predicated region
        $region29: #{tpu_custom_call.1} parent=23 // pred_check
          %p215 = pneg %p85
        $region30: #{tpu_custom_call.1} parent=23 // pred_check_branch
          %217 = sbr.rel (%p215) target = $region32
        $region31: #{tpu_custom_call.1} parent=23 // pred_region
          %s218 = sand.u32 %s75, 1
          %s219 = scalar_lea.sflag [#allocation6], %s218
          %s220 = sand.u32 %s75, 1
          %s221 = smul.addr %s220, 8
          %s222 = scalar_lea.vmem [#allocation5], %s221
          %s223 = sadd.s32 %s27, 1
          %s224 = smul.u32 %s223, 4
          %s225 = smul.u32 2, %s224
          %s227 = ssub.s32 128, 128
          %228 = vsyncadd %s219, %s227
          %s229 = smul.addr %s26, 18
          %s230 = sadd.s32 %s225, %s229
          %s231 = smul.addr %s230, 64
          %s232 = scalar_lea.hbm %s1, %s231
          %s233 = sshll.u32 %s222, 4
          %s234 = int_to_ptr.vmem [resolvable:$true] %s233
          %239 = dma.hbm_to_vmem [thread:$0]  %s232, 128, %s234, %s219, 64, 64, 4
        $region32: #{tpu_custom_call.1} parent=23 // pred_fallthru
          _
      $region24: #{tpu_custom_call.1} parent=5 // pred_fallthru
        _
      %p240 = scmp.le.s32.totalorder 1, %s19
      %p241 = scmp.lt.s32.totalorder %s19, 5
      %p242 = pnand %p240, %p241
      %p243 = pneg %p242
      // Predicated region
      $region33: #{tpu_custom_call.1} parent=5 // pred_check
        _
      $region34: #{tpu_custom_call.1} parent=5 // pred_check_branch
        %245 = sbr.rel (%p242) target = $region36
      $region35: #{tpu_custom_call.1} parent=5 // pred_region
        %s246 = ssub.s32 %s19, 1
        %s247 = sand.u32 %s46, 1
        %s248 = scalar_lea.sflag [#allocation3], %s247
        %s249 = sand.u32 %s46, 1
        %s250 = smul.addr %s249, 32
        %s251 = scalar_lea.vmem [#allocation2], %s250
        // Predicated region
        $region37: #{tpu_custom_call.1} parent=35 // pred_check
          %p252 = pneg %p59
        $region38: #{tpu_custom_call.1} parent=35 // pred_check_branch
          %254 = sbr.rel (%p252) target = $region40
        $region39: #{tpu_custom_call.1} parent=35 // pred_region
          %255 = dma.done %s248, 512
        $region40: #{tpu_custom_call.1} parent=35 // pred_fallthru
          _
        %s256 = sand.u32 %s78, 1
        %s257 = scalar_lea.sflag [#allocation6], %s256
        %s258 = sand.u32 %s78, 1
        %s259 = smul.addr %s258, 8
        %s260 = scalar_lea.vmem [#allocation5], %s259
        // Predicated region
        $region41: #{tpu_custom_call.1} parent=35 // pred_check
          %p261 = pneg %p91
        $region42: #{tpu_custom_call.1} parent=35 // pred_check_branch
          %263 = sbr.rel (%p261) target = $region44
        $region43: #{tpu_custom_call.1} parent=35 // pred_region
          %264 = dma.done %s257, 128
        $region44: #{tpu_custom_call.1} parent=35 // pred_fallthru
          _
        %s265 = sand.u32 %s46, 1
        %s266 = scalar_lea.sflag [#allocation3], %s265
        %s267 = sand.u32 %s46, 1
        %s268 = smul.addr %s267, 32
        %s269 = scalar_lea.vmem [#allocation2], %s268
        %p270 = pneg %p59
        %p271 = pneg %p56
        %s272 = sand.u32 %s78, 1
        %s273 = scalar_lea.sflag [#allocation6], %s272
        %s274 = sand.u32 %s78, 1
        %s275 = smul.addr %s274, 8
        %s276 = scalar_lea.vmem [#allocation5], %s275
        %p277 = pneg %p91
        %p278 = pneg %p88
        %p279 = pneg %p112
        %p280 = pneg %p109
        %p281 = pneg %p133
        %p282 = pneg %p130
        %p283 = pneg %p161
        %p284 = pneg %p158
        %s285 = sand.u32 %s148, 1
        %s286 = scalar_lea.sflag [#allocation4], %s285
        %s287 = sand.u32 %s148, 1
        %s288 = smul.addr %s287, 64
        %s289 = scalar_lea.vmem [#allocation7], %s288
        %s290 = smul.u32 8, %s29
        %s291 = ssub.s32 18, %s290
        %p292 = scmp.lt.s32.totalorder %s291, 8
        %s293 = scalar_select %p292, %s291, 8
        %s294 = smul.u32 64, %s293
        %s295 = sadd.s32 %s29, 1
        %s296 = smul.u32 %s295, 4
        %s297 = smul.u32 2, %s296
        %v299 = vld [vmem:[%s2] sm:$0xf]
        %s300 = scalar_lea.vmem %s2, 4
        %v301 = vld [vmem:[%s300] sm:$0xf]
        %s302 = scalar_lea.vmem %s2, 8
        %v303 = vld [vmem:[%s302] sm:$0xf]
        %s304 = scalar_lea.vmem %s2, 12
        %v305 = vld [vmem:[%s304] sm:$0xf]
        %s306 = scalar_lea.vmem %s2, 16
        %v307 = vld [vmem:[%s306] sm:$0xf]
        %s308 = scalar_lea.vmem %s2, 20
        %v309 = vld [vmem:[%s308] sm:$0xf]
        %s310 = scalar_lea.vmem %s2, 24
        %v311 = vld [vmem:[%s310] sm:$0xf]
        %s312 = scalar_lea.vmem %s2, 28
        %v313 = vld [vmem:[%s312] sm:$0xf]
        %s314 = scalar_lea.vmem %s2, 32
        %v315 = vld [vmem:[%s314] sm:$0xf]
        %v316 = vld [vmem:[%s3] sm:$0xf]
        %v317 = vld [vmem:[%s251] sm:$0xf]
        %319 = vset.pattern.permute.xlu0 0
        %320 = vperm.xlu0 %319, %v299
        %v321 = vpop.permute.xlu0 %320
        %v323 = vmul.f32 %v317, %v321
        %325 = vset.pattern.permute.xlu0 0
        %326 = vperm.xlu0 %325, %v301
        %v327 = vpop.permute.xlu0 %326
        %v329 = vmul.f32 %v317, %v327
        %331 = vrot.lane.b32.xlu0 %v329, 127
        %v332 = vpop.permute.xlu0 %331
        %v334 = vadd.f32 %v323, %v332
        %336 = vset.pattern.permute.xlu0 0
        %337 = vperm.xlu0 %336, %v303
        %v338 = vpop.permute.xlu0 %337
        %v340 = vmul.f32 %v317, %v338
        %342 = vrot.lane.b32.xlu0 %v340, 126
        %v343 = vpop.permute.xlu0 %342
        %v345 = vadd.f32 %v334, %v343
        %s346 = scalar_lea.vmem %s251, 4 [#allocation2]
        %v347 = vld [vmem:[%s346] sm:$0xf]
        %349 = vset.pattern.permute.xlu0 0
        %350 = vperm.xlu0 %349, %v305
        %v351 = vpop.permute.xlu0 %350
        %v353 = vmul.f32 %v347, %v351
        %v354 = vadd.f32 %v345, %v353
        %356 = vset.pattern.permute.xlu0 0
        %357 = vperm.xlu0 %356, %v307
        %v358 = vpop.permute.xlu0 %357
        %v360 = vmul.f32 %v347, %v358
        %362 = vrot.lane.b32.xlu0 %v360, 127
        %v363 = vpop.permute.xlu0 %362
        %v365 = vadd.f32 %v354, %v363
        %367 = vset.pattern.permute.xlu0 0
        %368 = vperm.xlu0 %367, %v309
        %v369 = vpop.permute.xlu0 %368
        %v371 = vmul.f32 %v347, %v369
        %373 = vrot.lane.b32.xlu0 %v371, 126
        %v374 = vpop.permute.xlu0 %373
        %v376 = vadd.f32 %v365, %v374
        %s377 = scalar_lea.vmem %s251, 8 [#allocation2]
        %v378 = vld [vmem:[%s377] sm:$0xf]
        %380 = vset.pattern.permute.xlu0 0
        %381 = vperm.xlu0 %380, %v311
        %v382 = vpop.permute.xlu0 %381
        %v384 = vmul.f32 %v378, %v382
        %v385 = vadd.f32 %v376, %v384
        %387 = vset.pattern.permute.xlu0 0
        %388 = vperm.xlu0 %387, %v313
        %v389 = vpop.permute.xlu0 %388
        %v391 = vmul.f32 %v378, %v389
        %393 = vrot.lane.b32.xlu0 %v391, 127
        %v394 = vpop.permute.xlu0 %393
        %v396 = vadd.f32 %v385, %v394
        %398 = vset.pattern.permute.xlu0 0
        %399 = vperm.xlu0 %398, %v315
        %v400 = vpop.permute.xlu0 %399
        %v402 = vmul.f32 %v378, %v400
        %404 = vrot.lane.b32.xlu0 %v402, 126
        %v405 = vpop.permute.xlu0 %404
        %v407 = vadd.f32 %v396, %v405
        %v408 = vpack.c.bf16 %v407, %v407
        %vm409 = vcmask 31744
        %v411 = vsel %vm409, %v316, 0
        %vm413 = vcmask 1041408
        %v415 = vsel %vm413, %v408, 0
        %417 = vmatprep.subr.bf16.mxu0 0
        %418 = vmatpush1.bf16.msra.mxu0 0
        %419 = vmatprep.subr.bf16.mxu0 0
        %420 = vmatpush1.bf16.msra.mxu0 0
        %421 = vmatprep.subr.bf16.mxu0 0
        %422 = vmatpush1.bf16.msra.mxu0 0
        %423 = vmatprep.subr.bf16.mxu0 0
        %424 = vmatpush1.bf16.msra.mxu0 0
        %425 = vmatprep.subr.bf16.mxu0 0
        %426 = vmatpush1.bf16.msra.mxu0 0
        %427 = vmatprep.subr.bf16.mxu0 0
        %428 = vmatpush1.bf16.msra.mxu0 0
        %429 = vmatprep.subr.bf16.mxu0 0
        %430 = vmatpush1.bf16.msra.mxu0 0
        %431 = vmatprep.subr.bf16.mxu0 0
        %432 = vmatpush1.bf16.msra.mxu0 %v415
        %433 = vmatprep.subr.bf16.mxu0 0
        %434 = vmatpush2.bf16.msra.mxu0 0
        %435 = vmatprep.subr.bf16.mxu0 0
        %436 = vmatpush2.bf16.msra.mxu0 0
        %437 = vmatprep.subr.bf16.mxu0 0
        %438 = vmatpush2.bf16.msra.mxu0 0
        %439 = vmatprep.subr.bf16.mxu0 0
        %440 = vmatpush2.bf16.msra.mxu0 0
        %441 = vmatprep.subr.bf16.mxu0 0
        %442 = vmatpush2.bf16.msra.mxu0 0
        %443 = vmatprep.subr.bf16.mxu0 0
        %444 = vmatpush2.bf16.msra.mxu0 0
        %445 = vmatprep.subr.bf16.mxu0 0
        %446 = vmatpush2.bf16.msra.mxu0 0
        %447 = vmatprep.subr.bf16.mxu0 0
        %448 = vmatpush2.bf16.msra.mxu0 0
        %449 = vmatprep.mubr.bf16.mxu0 0
        %450 = vmatmul.mubr.bf16.gmra.mxu0 %v411
        %v451 = vpop.f32.mrf.mxu0
        %v452 = vadd.f32 0.0, %v451
        %v453 = vpop.f32.mrf.mxu0
        %v454 = vpop.f32.mrf.mxu0
        %v455 = vpop.f32.mrf.mxu0
        %456 = vdwg.mxu0
        %v458 = vcombine.high %v452, %v452
        %v460 = vunpack.c.l.s4 1966171168
        %v461 = vunpack.c.0.s8 %v460
        %v462 = vlaneseq
        %v463 = vshrl.u32 %v462, 7
        %v464 = vsub.s32 %v461, %v463
        %v465 = vrot.slane %v452, %v464
        %v467 = vunpack.c.l.s4 1966171168
        %v468 = vunpack.c.0.s8 %v467
        %v469 = vlaneseq
        %v470 = vshrl.u32 %v469, 7
        %v471 = vsub.s32 %v468, %v470
        %v472 = vrot.slane %v458, %v471
        %v473 = vcombine.high %v465, %v465
        %v474 = vcombine.high %v472, %v472
        %v476 = vunpack.c.l.s4 1966171168
        %v477 = vunpack.c.0.s8 %v476
        %v478 = vlaneseq
        %v479 = vshrl.u32 %v478, 7
        %v480 = vsub.s32 %v477, %v479
        %v481 = vrot.slane %v465, %v480
        %v483 = vunpack.c.l.s4 1966171168
        %v484 = vunpack.c.0.s8 %v483
        %v485 = vlaneseq
        %v486 = vshrl.u32 %v485, 7
        %v487 = vsub.s32 %v484, %v486
        %v488 = vrot.slane %v472, %v487
        %v490 = vunpack.c.l.s4 1966171168
        %v491 = vunpack.c.0.s8 %v490
        %v492 = vlaneseq
        %v493 = vshrl.u32 %v492, 7
        %v494 = vsub.s32 %v491, %v493
        %v495 = vrot.slane %v473, %v494
        %v497 = vunpack.c.l.s4 1966171168
        %v498 = vunpack.c.0.s8 %v497
        %v499 = vlaneseq
        %v500 = vshrl.u32 %v499, 7
        %v501 = vsub.s32 %v498, %v500
        %v502 = vrot.slane %v474, %v501
        %v503 = vcombine.high %v481, %v481
        %v504 = vcombine.high %v488, %v488
        %v505 = vcombine.high %v495, %v495
        %v506 = vcombine.high %v502, %v502
        %vm515 = vcmask 122880
        %516 = vst.msk [vmem:[%s289] sm:$0x1] %vm515, %v481
        %517 = vst.msk [vmem:[%s289 + $0x8] sm:$0x1] %vm515, %v495
        %518 = vst.msk [vmem:[%s289 + $0x10] sm:$0x1] %vm515, %v503
        %519 = vst.msk [vmem:[%s289 + $0x18] sm:$0x1] %vm515, %v505
        %520 = vst.msk [vmem:[%s289 + $0x20] sm:$0x1] %vm515, %v488
        %521 = vst.msk [vmem:[%s289 + $0x28] sm:$0x1] %vm515, %v502
        %522 = vst.msk [vmem:[%s289 + $0x30] sm:$0x1] %vm515, %v504
        %523 = vst.msk [vmem:[%s289 + $0x38] sm:$0x1] %vm515, %v506
        %v524 = vld [vmem:[%s346] sm:$0xf]
        %v525 = vmul.f32 %v524, %v321
        %v526 = vmul.f32 %v524, %v327
        %528 = vrot.lane.b32.xlu0 %v526, 127
        %v529 = vpop.permute.xlu0 %528
        %v531 = vadd.f32 %v525, %v529
        %v532 = vmul.f32 %v524, %v338
        %534 = vrot.lane.b32.xlu0 %v532, 126
        %v535 = vpop.permute.xlu0 %534
        %v537 = vadd.f32 %v531, %v535
        %v538 = vld [vmem:[%s377] sm:$0xf]
        %v539 = vmul.f32 %v538, %v351
        %v540 = vadd.f32 %v537, %v539
        %v541 = vmul.f32 %v538, %v358
        %543 = vrot.lane.b32.xlu0 %v541, 127
        %v544 = vpop.permute.xlu0 %543
        %v546 = vadd.f32 %v540, %v544
        %v547 = vmul.f32 %v538, %v369
        %549 = vrot.lane.b32.xlu0 %v547, 126
        %v550 = vpop.permute.xlu0 %549
        %v552 = vadd.f32 %v546, %v550
        %s553 = scalar_lea.vmem %s251, 12 [#allocation2]
        %v554 = vld [vmem:[%s553] sm:$0xf]
        %v555 = vmul.f32 %v554, %v382
        %v556 = vadd.f32 %v552, %v555
        %v557 = vmul.f32 %v554, %v389
        %559 = vrot.lane.b32.xlu0 %v557, 127
        %v560 = vpop.permute.xlu0 %559
        %v562 = vadd.f32 %v556, %v560
        %v563 = vmul.f32 %v554, %v400
        %565 = vrot.lane.b32.xlu0 %v563, 126
        %v566 = vpop.permute.xlu0 %565
        %v568 = vadd.f32 %v562, %v566
        %v569 = vpack.c.bf16 %v568, %v568
        %v571 = vsel %vm413, %v569, 0
        %573 = vmatprep.subr.bf16.mxu0 0
        %574 = vmatpush1.bf16.msra.mxu0 0
        %575 = vmatprep.subr.bf16.mxu0 0
        %576 = vmatpush1.bf16.msra.mxu0 0
        %577 = vmatprep.subr.bf16.mxu0 0
        %578 = vmatpush1.bf16.msra.mxu0 0
        %579 = vmatprep.subr.bf16.mxu0 0
        %580 = vmatpush1.bf16.msra.mxu0 0
        %581 = vmatprep.subr.bf16.mxu0 0
        %582 = vmatpush1.bf16.msra.mxu0 0
        %583 = vmatprep.subr.bf16.mxu0 0
        %584 = vmatpush1.bf16.msra.mxu0 0
        %585 = vmatprep.subr.bf16.mxu0 0
        %586 = vmatpush1.bf16.msra.mxu0 0
        %587 = vmatprep.subr.bf16.mxu0 0
        %588 = vmatpush1.bf16.msra.mxu0 %v571
        %589 = vmatprep.subr.bf16.mxu0 0
        %590 = vmatpush2.bf16.msra.mxu0 0
        %591 = vmatprep.subr.bf16.mxu0 0
        %592 = vmatpush2.bf16.msra.mxu0 0
        %593 = vmatprep.subr.bf16.mxu0 0
        %594 = vmatpush2.bf16.msra.mxu0 0
        %595 = vmatprep.subr.bf16.mxu0 0
        %596 = vmatpush2.bf16.msra.mxu0 0
        %597 = vmatprep.subr.bf16.mxu0 0
        %598 = vmatpush2.bf16.msra.mxu0 0
        %599 = vmatprep.subr.bf16.mxu0 0
        %600 = vmatpush2.bf16.msra.mxu0 0
        %601 = vmatprep.subr.bf16.mxu0 0
        %602 = vmatpush2.bf16.msra.mxu0 0
        %603 = vmatprep.subr.bf16.mxu0 0
        %604 = vmatpush2.bf16.msra.mxu0 0
        %605 = vmatprep.mubr.bf16.mxu0 0
        %606 = vmatmul.mubr.bf16.gmra.mxu0 %v411
        %v607 = vpop.f32.mrf.mxu0
        %v608 = vadd.f32 0.0, %v607
        %v609 = vpop.f32.mrf.mxu0
        %v610 = vpop.f32.mrf.mxu0
        %v611 = vpop.f32.mrf.mxu0
        %612 = vdwg.mxu0
        %v614 = vcombine.high %v608, %v608
        %v616 = vunpack.c.l.s4 1966171168
        %v617 = vunpack.c.0.s8 %v616
        %v618 = vlaneseq
        %v619 = vshrl.u32 %v618, 7
        %v620 = vsub.s32 %v617, %v619
        %v621 = vrot.slane %v608, %v620
        %v623 = vunpack.c.l.s4 1966171168
        %v624 = vunpack.c.0.s8 %v623
        %v625 = vlaneseq
        %v626 = vshrl.u32 %v625, 7
        %v627 = vsub.s32 %v624, %v626
        %v628 = vrot.slane %v614, %v627
        %v629 = vcombine.high %v621, %v621
        %v630 = vcombine.high %v628, %v628
        %v632 = vunpack.c.l.s4 1966171168
        %v633 = vunpack.c.0.s8 %v632
        %v634 = vlaneseq
        %v635 = vshrl.u32 %v634, 7
        %v636 = vsub.s32 %v633, %v635
        %v637 = vrot.slane %v621, %v636
        %v639 = vunpack.c.l.s4 1966171168
        %v640 = vunpack.c.0.s8 %v639
        %v641 = vlaneseq
        %v642 = vshrl.u32 %v641, 7
        %v643 = vsub.s32 %v640, %v642
        %v644 = vrot.slane %v628, %v643
        %v646 = vunpack.c.l.s4 1966171168
        %v647 = vunpack.c.0.s8 %v646
        %v648 = vlaneseq
        %v649 = vshrl.u32 %v648, 7
        %v650 = vsub.s32 %v647, %v649
        %v651 = vrot.slane %v629, %v650
        %v653 = vunpack.c.l.s4 1966171168
        %v654 = vunpack.c.0.s8 %v653
        %v655 = vlaneseq
        %v656 = vshrl.u32 %v655, 7
        %v657 = vsub.s32 %v654, %v656
        %v658 = vrot.slane %v630, %v657
        %v659 = vcombine.high %v637, %v637
        %v660 = vcombine.high %v644, %v644
        %v661 = vcombine.high %v651, %v651
        %v662 = vcombine.high %v658, %v658
        %671 = vst.msk [vmem:[%s289 + $0x1] sm:$0x1] %vm515, %v637
        %672 = vst.msk [vmem:[%s289 + $0x9] sm:$0x1] %vm515, %v651
        %673 = vst.msk [vmem:[%s289 + $0x11] sm:$0x1] %vm515, %v659
        %674 = vst.msk [vmem:[%s289 + $0x19] sm:$0x1] %vm515, %v661
        %675 = vst.msk [vmem:[%s289 + $0x21] sm:$0x1] %vm515, %v644
        %676 = vst.msk [vmem:[%s289 + $0x29] sm:$0x1] %vm515, %v658
        %677 = vst.msk [vmem:[%s289 + $0x31] sm:$0x1] %vm515, %v660
        %678 = vst.msk [vmem:[%s289 + $0x39] sm:$0x1] %vm515, %v662
        %v679 = vld [vmem:[%s377] sm:$0xf]
        %v680 = vmul.f32 %v679, %v321
        %v681 = vmul.f32 %v679, %v327
        %683 = vrot.lane.b32.xlu0 %v681, 127
        %v684 = vpop.permute.xlu0 %683
        %v686 = vadd.f32 %v680, %v684
        %v687 = vmul.f32 %v679, %v338
        %689 = vrot.lane.b32.xlu0 %v687, 126
        %v690 = vpop.permute.xlu0 %689
        %v692 = vadd.f32 %v686, %v690
        %v693 = vld [vmem:[%s553] sm:$0xf]
        %v694 = vmul.f32 %v693, %v351
        %v695 = vadd.f32 %v692, %v694
        %v696 = vmul.f32 %v693, %v358
        %698 = vrot.lane.b32.xlu0 %v696, 127
        %v699 = vpop.permute.xlu0 %698
        %v701 = vadd.f32 %v695, %v699
        %v702 = vmul.f32 %v693, %v369
        %704 = vrot.lane.b32.xlu0 %v702, 126
        %v705 = vpop.permute.xlu0 %704
        %v707 = vadd.f32 %v701, %v705
        %s708 = scalar_lea.vmem %s251, 16 [#allocation2]
        %v709 = vld [vmem:[%s708] sm:$0xf]
        %v710 = vmul.f32 %v709, %v382
        %v711 = vadd.f32 %v707, %v710
        %v712 = vmul.f32 %v709, %v389
        %714 = vrot.lane.b32.xlu0 %v712, 127
        %v715 = vpop.permute.xlu0 %714
        %v717 = vadd.f32 %v711, %v715
        %v718 = vmul.f32 %v709, %v400
        %720 = vrot.lane.b32.xlu0 %v718, 126
        %v721 = vpop.permute.xlu0 %720
        %v723 = vadd.f32 %v717, %v721
        %v724 = vpack.c.bf16 %v723, %v723
        %v726 = vsel %vm413, %v724, 0
        %728 = vmatprep.subr.bf16.mxu0 0
        %729 = vmatpush1.bf16.msra.mxu0 0
        %730 = vmatprep.subr.bf16.mxu0 0
        %731 = vmatpush1.bf16.msra.mxu0 0
        %732 = vmatprep.subr.bf16.mxu0 0
        %733 = vmatpush1.bf16.msra.mxu0 0
        %734 = vmatprep.subr.bf16.mxu0 0
        %735 = vmatpush1.bf16.msra.mxu0 0
        %736 = vmatprep.subr.bf16.mxu0 0
        %737 = vmatpush1.bf16.msra.mxu0 0
        %738 = vmatprep.subr.bf16.mxu0 0
        %739 = vmatpush1.bf16.msra.mxu0 0
        %740 = vmatprep.subr.bf16.mxu0 0
        %741 = vmatpush1.bf16.msra.mxu0 0
        %742 = vmatprep.subr.bf16.mxu0 0
        %743 = vmatpush1.bf16.msra.mxu0 %v726
        %744 = vmatprep.subr.bf16.mxu0 0
        %745 = vmatpush2.bf16.msra.mxu0 0
        %746 = vmatprep.subr.bf16.mxu0 0
        %747 = vmatpush2.bf16.msra.mxu0 0
        %748 = vmatprep.subr.bf16.mxu0 0
        %749 = vmatpush2.bf16.msra.mxu0 0
        %750 = vmatprep.subr.bf16.mxu0 0
        %751 = vmatpush2.bf16.msra.mxu0 0
        %752 = vmatprep.subr.bf16.mxu0 0
        %753 = vmatpush2.bf16.msra.mxu0 0
        %754 = vmatprep.subr.bf16.mxu0 0
        %755 = vmatpush2.bf16.msra.mxu0 0
        %756 = vmatprep.subr.bf16.mxu0 0
        %757 = vmatpush2.bf16.msra.mxu0 0
        %758 = vmatprep.subr.bf16.mxu0 0
        %759 = vmatpush2.bf16.msra.mxu0 0
        %760 = vmatprep.mubr.bf16.mxu0 0
        %761 = vmatmul.mubr.bf16.gmra.mxu0 %v411
        %v762 = vpop.f32.mrf.mxu0
        %v763 = vadd.f32 0.0, %v762
        %v764 = vpop.f32.mrf.mxu0
        %v765 = vpop.f32.mrf.mxu0
        %v766 = vpop.f32.mrf.mxu0
        %767 = vdwg.mxu0
        %v769 = vcombine.high %v763, %v763
        %v771 = vunpack.c.l.s4 1966171168
        %v772 = vunpack.c.0.s8 %v771
        %v773 = vlaneseq
        %v774 = vshrl.u32 %v773, 7
        %v775 = vsub.s32 %v772, %v774
        %v776 = vrot.slane %v763, %v775
        %v778 = vunpack.c.l.s4 1966171168
        %v779 = vunpack.c.0.s8 %v778
        %v780 = vlaneseq
        %v781 = vshrl.u32 %v780, 7
        %v782 = vsub.s32 %v779, %v781
        %v783 = vrot.slane %v769, %v782
        %v784 = vcombine.high %v776, %v776
        %v785 = vcombine.high %v783, %v783
        %v787 = vunpack.c.l.s4 1966171168
        %v788 = vunpack.c.0.s8 %v787
        %v789 = vlaneseq
        %v790 = vshrl.u32 %v789, 7
        %v791 = vsub.s32 %v788, %v790
        %v792 = vrot.slane %v776, %v791
        %v794 = vunpack.c.l.s4 1966171168
        %v795 = vunpack.c.0.s8 %v794
        %v796 = vlaneseq
        %v797 = vshrl.u32 %v796, 7
        %v798 = vsub.s32 %v795, %v797
        %v799 = vrot.slane %v783, %v798
        %v801 = vunpack.c.l.s4 1966171168
        %v802 = vunpack.c.0.s8 %v801
        %v803 = vlaneseq
        %v804 = vshrl.u32 %v803, 7
        %v805 = vsub.s32 %v802, %v804
        %v806 = vrot.slane %v784, %v805
        %v808 = vunpack.c.l.s4 1966171168
        %v809 = vunpack.c.0.s8 %v808
        %v810 = vlaneseq
        %v811 = vshrl.u32 %v810, 7
        %v812 = vsub.s32 %v809, %v811
        %v813 = vrot.slane %v785, %v812
        %v814 = vcombine.high %v792, %v792
        %v815 = vcombine.high %v799, %v799
        %v816 = vcombine.high %v806, %v806
        %v817 = vcombine.high %v813, %v813
        %826 = vst.msk [vmem:[%s289 + $0x2] sm:$0x1] %vm515, %v792
        %827 = vst.msk [vmem:[%s289 + $0xa] sm:$0x1] %vm515, %v806
        %828 = vst.msk [vmem:[%s289 + $0x12] sm:$0x1] %vm515, %v814
        %829 = vst.msk [vmem:[%s289 + $0x1a] sm:$0x1] %vm515, %v816
        %830 = vst.msk [vmem:[%s289 + $0x22] sm:$0x1] %vm515, %v799
        %831 = vst.msk [vmem:[%s289 + $0x2a] sm:$0x1] %vm515, %v813
        %832 = vst.msk [vmem:[%s289 + $0x32] sm:$0x1] %vm515, %v815
        %833 = vst.msk [vmem:[%s289 + $0x3a] sm:$0x1] %vm515, %v817
        %v834 = vld [vmem:[%s553] sm:$0xf]
        %v835 = vmul.f32 %v834, %v321
        %v836 = vmul.f32 %v834, %v327
        %838 = vrot.lane.b32.xlu0 %v836, 127
        %v839 = vpop.permute.xlu0 %838
        %v841 = vadd.f32 %v835, %v839
        %v842 = vmul.f32 %v834, %v338
        %844 = vrot.lane.b32.xlu0 %v842, 126
        %v845 = vpop.permute.xlu0 %844
        %v847 = vadd.f32 %v841, %v845
        %v848 = vld [vmem:[%s708] sm:$0xf]
        %v849 = vmul.f32 %v848, %v351
        %v850 = vadd.f32 %v847, %v849
        %v851 = vmul.f32 %v848, %v358
        %853 = vrot.lane.b32.xlu0 %v851, 127
        %v854 = vpop.permute.xlu0 %853
        %v856 = vadd.f32 %v850, %v854
        %v857 = vmul.f32 %v848, %v369
        %859 = vrot.lane.b32.xlu0 %v857, 126
        %v860 = vpop.permute.xlu0 %859
        %v862 = vadd.f32 %v856, %v860
        %s863 = scalar_lea.vmem %s251, 20 [#allocation2]
        %v864 = vld [vmem:[%s863] sm:$0xf]
        %v865 = vmul.f32 %v864, %v382
        %v866 = vadd.f32 %v862, %v865
        %v867 = vmul.f32 %v864, %v389
        %869 = vrot.lane.b32.xlu0 %v867, 127
        %v870 = vpop.permute.xlu0 %869
        %v872 = vadd.f32 %v866, %v870
        %v873 = vmul.f32 %v864, %v400
        %875 = vrot.lane.b32.xlu0 %v873, 126
        %v876 = vpop.permute.xlu0 %875
        %v878 = vadd.f32 %v872, %v876
        %v879 = vpack.c.bf16 %v878, %v878
        %v881 = vsel %vm413, %v879, 0
        %883 = vmatprep.subr.bf16.mxu0 0
        %884 = vmatpush1.bf16.msra.mxu0 0
        %885 = vmatprep.subr.bf16.mxu0 0
        %886 = vmatpush1.bf16.msra.mxu0 0
        %887 = vmatprep.subr.bf16.mxu0 0
        %888 = vmatpush1.bf16.msra.mxu0 0
        %889 = vmatprep.subr.bf16.mxu0 0
        %890 = vmatpush1.bf16.msra.mxu0 0
        %891 = vmatprep.subr.bf16.mxu0 0
        %892 = vmatpush1.bf16.msra.mxu0 0
        %893 = vmatprep.subr.bf16.mxu0 0
        %894 = vmatpush1.bf16.msra.mxu0 0
        %895 = vmatprep.subr.bf16.mxu0 0
        %896 = vmatpush1.bf16.msra.mxu0 0
        %897 = vmatprep.subr.bf16.mxu0 0
        %898 = vmatpush1.bf16.msra.mxu0 %v881
        %899 = vmatprep.subr.bf16.mxu0 0
        %900 = vmatpush2.bf16.msra.mxu0 0
        %901 = vmatprep.subr.bf16.mxu0 0
        %902 = vmatpush2.bf16.msra.mxu0 0
        %903 = vmatprep.subr.bf16.mxu0 0
        %904 = vmatpush2.bf16.msra.mxu0 0
        %905 = vmatprep.subr.bf16.mxu0 0
        %906 = vmatpush2.bf16.msra.mxu0 0
        %907 = vmatprep.subr.bf16.mxu0 0
        %908 = vmatpush2.bf16.msra.mxu0 0
        %909 = vmatprep.subr.bf16.mxu0 0
        %910 = vmatpush2.bf16.msra.mxu0 0
        %911 = vmatprep.subr.bf16.mxu0 0
        %912 = vmatpush2.bf16.msra.mxu0 0
        %913 = vmatprep.subr.bf16.mxu0 0
        %914 = vmatpush2.bf16.msra.mxu0 0
        %915 = vmatprep.mubr.bf16.mxu0 0
        %916 = vmatmul.mubr.bf16.gmra.mxu0 %v411
        %v917 = vpop.f32.mrf.mxu0
        %v918 = vadd.f32 0.0, %v917
        %v919 = vpop.f32.mrf.mxu0
        %v920 = vpop.f32.mrf.mxu0
        %v921 = vpop.f32.mrf.mxu0
        %922 = vdwg.mxu0
        %v924 = vcombine.high %v918, %v918
        %v926 = vunpack.c.l.s4 1966171168
        %v927 = vunpack.c.0.s8 %v926
        %v928 = vlaneseq
        %v929 = vshrl.u32 %v928, 7
        %v930 = vsub.s32 %v927, %v929
        %v931 = vrot.slane %v918, %v930
        %v933 = vunpack.c.l.s4 1966171168
        %v934 = vunpack.c.0.s8 %v933
        %v935 = vlaneseq
        %v936 = vshrl.u32 %v935, 7
        %v937 = vsub.s32 %v934, %v936
        %v938 = vrot.slane %v924, %v937
        %v939 = vcombine.high %v931, %v931
        %v940 = vcombine.high %v938, %v938
        %v942 = vunpack.c.l.s4 1966171168
        %v943 = vunpack.c.0.s8 %v942
        %v944 = vlaneseq
        %v945 = vshrl.u32 %v944, 7
        %v946 = vsub.s32 %v943, %v945
        %v947 = vrot.slane %v931, %v946
        %v949 = vunpack.c.l.s4 1966171168
        %v950 = vunpack.c.0.s8 %v949
        %v951 = vlaneseq
        %v952 = vshrl.u32 %v951, 7
        %v953 = vsub.s32 %v950, %v952
        %v954 = vrot.slane %v938, %v953
        %v956 = vunpack.c.l.s4 1966171168
        %v957 = vunpack.c.0.s8 %v956
        %v958 = vlaneseq
        %v959 = vshrl.u32 %v958, 7
        %v960 = vsub.s32 %v957, %v959
        %v961 = vrot.slane %v939, %v960
        %v963 = vunpack.c.l.s4 1966171168
        %v964 = vunpack.c.0.s8 %v963
        %v965 = vlaneseq
        %v966 = vshrl.u32 %v965, 7
        %v967 = vsub.s32 %v964, %v966
        %v968 = vrot.slane %v940, %v967
        %v969 = vcombine.high %v947, %v947
        %v970 = vcombine.high %v954, %v954
        %v971 = vcombine.high %v961, %v961
        %v972 = vcombine.high %v968, %v968
        %981 = vst.msk [vmem:[%s289 + $0x3] sm:$0x1] %vm515, %v947
        %982 = vst.msk [vmem:[%s289 + $0xb] sm:$0x1] %vm515, %v961
        %983 = vst.msk [vmem:[%s289 + $0x13] sm:$0x1] %vm515, %v969
        %984 = vst.msk [vmem:[%s289 + $0x1b] sm:$0x1] %vm515, %v971
        %985 = vst.msk [vmem:[%s289 + $0x23] sm:$0x1] %vm515, %v954
        %986 = vst.msk [vmem:[%s289 + $0x2b] sm:$0x1] %vm515, %v968
        %987 = vst.msk [vmem:[%s289 + $0x33] sm:$0x1] %vm515, %v970
        %988 = vst.msk [vmem:[%s289 + $0x3b] sm:$0x1] %vm515, %v972
        %v989 = vld [vmem:[%s708] sm:$0xf]
        %v990 = vmul.f32 %v989, %v321
        %v991 = vmul.f32 %v989, %v327
        %993 = vrot.lane.b32.xlu0 %v991, 127
        %v994 = vpop.permute.xlu0 %993
        %v996 = vadd.f32 %v990, %v994
        %v997 = vmul.f32 %v989, %v338
        %999 = vrot.lane.b32.xlu0 %v997, 126
        %v1000 = vpop.permute.xlu0 %999
        %v1002 = vadd.f32 %v996, %v1000
        %v1003 = vld [vmem:[%s863] sm:$0xf]
        %v1004 = vmul.f32 %v1003, %v351
        %v1005 = vadd.f32 %v1002, %v1004
        %v1006 = vmul.f32 %v1003, %v358
        %1008 = vrot.lane.b32.xlu0 %v1006, 127
        %v1009 = vpop.permute.xlu0 %1008
        %v1011 = vadd.f32 %v1005, %v1009
        %v1012 = vmul.f32 %v1003, %v369
        %1014 = vrot.lane.b32.xlu0 %v1012, 126
        %v1015 = vpop.permute.xlu0 %1014
        %v1017 = vadd.f32 %v1011, %v1015
        %s1018 = scalar_lea.vmem %s251, 24 [#allocation2]
        %v1019 = vld [vmem:[%s1018] sm:$0xf]
        %v1020 = vmul.f32 %v1019, %v382
        %v1021 = vadd.f32 %v1017, %v1020
        %v1022 = vmul.f32 %v1019, %v389
        %1024 = vrot.lane.b32.xlu0 %v1022, 127
        %v1025 = vpop.permute.xlu0 %1024
        %v1027 = vadd.f32 %v1021, %v1025
        %v1028 = vmul.f32 %v1019, %v400
        %1030 = vrot.lane.b32.xlu0 %v1028, 126
        %v1031 = vpop.permute.xlu0 %1030
        %v1033 = vadd.f32 %v1027, %v1031
        %v1034 = vpack.c.bf16 %v1033, %v1033
        %v1036 = vsel %vm413, %v1034, 0
        %1038 = vmatprep.subr.bf16.mxu0 0
        %1039 = vmatpush1.bf16.msra.mxu0 0
        %1040 = vmatprep.subr.bf16.mxu0 0
        %1041 = vmatpush1.bf16.msra.mxu0 0
        %1042 = vmatprep.subr.bf16.mxu0 0
        %1043 = vmatpush1.bf16.msra.mxu0 0
        %1044 = vmatprep.subr.bf16.mxu0 0
        %1045 = vmatpush1.bf16.msra.mxu0 0
        %1046 = vmatprep.subr.bf16.mxu0 0
        %1047 = vmatpush1.bf16.msra.mxu0 0
        %1048 = vmatprep.subr.bf16.mxu0 0
        %1049 = vmatpush1.bf16.msra.mxu0 0
        %1050 = vmatprep.subr.bf16.mxu0 0
        %1051 = vmatpush1.bf16.msra.mxu0 0
        %1052 = vmatprep.subr.bf16.mxu0 0
        %1053 = vmatpush1.bf16.msra.mxu0 %v1036
        %1054 = vmatprep.subr.bf16.mxu0 0
        %1055 = vmatpush2.bf16.msra.mxu0 0
        %1056 = vmatprep.subr.bf16.mxu0 0
        %1057 = vmatpush2.bf16.msra.mxu0 0
        %1058 = vmatprep.subr.bf16.mxu0 0
        %1059 = vmatpush2.bf16.msra.mxu0 0
        %1060 = vmatprep.subr.bf16.mxu0 0
        %1061 = vmatpush2.bf16.msra.mxu0 0
        %1062 = vmatprep.subr.bf16.mxu0 0
        %1063 = vmatpush2.bf16.msra.mxu0 0
        %1064 = vmatprep.subr.bf16.mxu0 0
        %1065 = vmatpush2.bf16.msra.mxu0 0
        %1066 = vmatprep.subr.bf16.mxu0 0
        %1067 = vmatpush2.bf16.msra.mxu0 0
        %1068 = vmatprep.subr.bf16.mxu0 0
        %1069 = vmatpush2.bf16.msra.mxu0 0
        %1070 = vmatprep.mubr.bf16.mxu0 0
        %1071 = vmatmul.mubr.bf16.gmra.mxu0 %v411
        %v1072 = vpop.f32.mrf.mxu0
        %v1073 = vadd.f32 0.0, %v1072
        %v1074 = vpop.f32.mrf.mxu0
        %v1075 = vpop.f32.mrf.mxu0
        %v1076 = vpop.f32.mrf.mxu0
        %1077 = vdwg.mxu0
        %v1079 = vcombine.high %v1073, %v1073
        %v1081 = vunpack.c.l.s4 1966171168
        %v1082 = vunpack.c.0.s8 %v1081
        %v1083 = vlaneseq
        %v1084 = vshrl.u32 %v1083, 7
        %v1085 = vsub.s32 %v1082, %v1084
        %v1086 = vrot.slane %v1073, %v1085
        %v1088 = vunpack.c.l.s4 1966171168
        %v1089 = vunpack.c.0.s8 %v1088
        %v1090 = vlaneseq
        %v1091 = vshrl.u32 %v1090, 7
        %v1092 = vsub.s32 %v1089, %v1091
        %v1093 = vrot.slane %v1079, %v1092
        %v1094 = vcombine.high %v1086, %v1086
        %v1095 = vcombine.high %v1093, %v1093
        %v1097 = vunpack.c.l.s4 1966171168
        %v1098 = vunpack.c.0.s8 %v1097
        %v1099 = vlaneseq
        %v1100 = vshrl.u32 %v1099, 7
        %v1101 = vsub.s32 %v1098, %v1100
        %v1102 = vrot.slane %v1086, %v1101
        %v1104 = vunpack.c.l.s4 1966171168
        %v1105 = vunpack.c.0.s8 %v1104
        %v1106 = vlaneseq
        %v1107 = vshrl.u32 %v1106, 7
        %v1108 = vsub.s32 %v1105, %v1107
        %v1109 = vrot.slane %v1093, %v1108
        %v1111 = vunpack.c.l.s4 1966171168
        %v1112 = vunpack.c.0.s8 %v1111
        %v1113 = vlaneseq
        %v1114 = vshrl.u32 %v1113, 7
        %v1115 = vsub.s32 %v1112, %v1114
        %v1116 = vrot.slane %v1094, %v1115
        %v1118 = vunpack.c.l.s4 1966171168
        %v1119 = vunpack.c.0.s8 %v1118
        %v1120 = vlaneseq
        %v1121 = vshrl.u32 %v1120, 7
        %v1122 = vsub.s32 %v1119, %v1121
        %v1123 = vrot.slane %v1095, %v1122
        %v1124 = vcombine.high %v1102, %v1102
        %v1125 = vcombine.high %v1109, %v1109
        %v1126 = vcombine.high %v1116, %v1116
        %v1127 = vcombine.high %v1123, %v1123
        %1136 = vst.msk [vmem:[%s289 + $0x4] sm:$0x1] %vm515, %v1102
        %1137 = vst.msk [vmem:[%s289 + $0xc] sm:$0x1] %vm515, %v1116
        %1138 = vst.msk [vmem:[%s289 + $0x14] sm:$0x1] %vm515, %v1124
        %1139 = vst.msk [vmem:[%s289 + $0x1c] sm:$0x1] %vm515, %v1126
        %1140 = vst.msk [vmem:[%s289 + $0x24] sm:$0x1] %vm515, %v1109
        %1141 = vst.msk [vmem:[%s289 + $0x2c] sm:$0x1] %vm515, %v1123
        %1142 = vst.msk [vmem:[%s289 + $0x34] sm:$0x1] %vm515, %v1125
        %1143 = vst.msk [vmem:[%s289 + $0x3c] sm:$0x1] %vm515, %v1127
        %v1144 = vld [vmem:[%s863] sm:$0xf]
        %v1145 = vmul.f32 %v1144, %v321
        %v1146 = vmul.f32 %v1144, %v327
        %1148 = vrot.lane.b32.xlu0 %v1146, 127
        %v1149 = vpop.permute.xlu0 %1148
        %v1151 = vadd.f32 %v1145, %v1149
        %v1152 = vmul.f32 %v1144, %v338
        %1154 = vrot.lane.b32.xlu0 %v1152, 126
        %v1155 = vpop.permute.xlu0 %1154
        %v1157 = vadd.f32 %v1151, %v1155
        %v1158 = vld [vmem:[%s1018] sm:$0xf]
        %v1159 = vmul.f32 %v1158, %v351
        %v1160 = vadd.f32 %v1157, %v1159
        %v1161 = vmul.f32 %v1158, %v358
        %1163 = vrot.lane.b32.xlu0 %v1161, 127
        %v1164 = vpop.permute.xlu0 %1163
        %v1166 = vadd.f32 %v1160, %v1164
        %v1167 = vmul.f32 %v1158, %v369
        %1169 = vrot.lane.b32.xlu0 %v1167, 126
        %v1170 = vpop.permute.xlu0 %1169
        %v1172 = vadd.f32 %v1166, %v1170
        %s1173 = scalar_lea.vmem %s251, 28 [#allocation2]
        %v1174 = vld [vmem:[%s1173] sm:$0xf]
        %v1175 = vmul.f32 %v1174, %v382
        %v1176 = vadd.f32 %v1172, %v1175
        %v1177 = vmul.f32 %v1174, %v389
        %1179 = vrot.lane.b32.xlu0 %v1177, 127
        %v1180 = vpop.permute.xlu0 %1179
        %v1182 = vadd.f32 %v1176, %v1180
        %v1183 = vmul.f32 %v1174, %v400
        %1185 = vrot.lane.b32.xlu0 %v1183, 126
        %v1186 = vpop.permute.xlu0 %1185
        %v1188 = vadd.f32 %v1182, %v1186
        %v1189 = vpack.c.bf16 %v1188, %v1188
        %v1191 = vsel %vm413, %v1189, 0
        %1193 = vmatprep.subr.bf16.mxu0 0
        %1194 = vmatpush1.bf16.msra.mxu0 0
        %1195 = vmatprep.subr.bf16.mxu0 0
        %1196 = vmatpush1.bf16.msra.mxu0 0
        %1197 = vmatprep.subr.bf16.mxu0 0
        %1198 = vmatpush1.bf16.msra.mxu0 0
        %1199 = vmatprep.subr.bf16.mxu0 0
        %1200 = vmatpush1.bf16.msra.mxu0 0
        %1201 = vmatprep.subr.bf16.mxu0 0
        %1202 = vmatpush1.bf16.msra.mxu0 0
        %1203 = vmatprep.subr.bf16.mxu0 0
        %1204 = vmatpush1.bf16.msra.mxu0 0
        %1205 = vmatprep.subr.bf16.mxu0 0
        %1206 = vmatpush1.bf16.msra.mxu0 0
        %1207 = vmatprep.subr.bf16.mxu0 0
        %1208 = vmatpush1.bf16.msra.mxu0 %v1191
        %1209 = vmatprep.subr.bf16.mxu0 0
        %1210 = vmatpush2.bf16.msra.mxu0 0
        %1211 = vmatprep.subr.bf16.mxu0 0
        %1212 = vmatpush2.bf16.msra.mxu0 0
        %1213 = vmatprep.subr.bf16.mxu0 0
        %1214 = vmatpush2.bf16.msra.mxu0 0
        %1215 = vmatprep.subr.bf16.mxu0 0
        %1216 = vmatpush2.bf16.msra.mxu0 0
        %1217 = vmatprep.subr.bf16.mxu0 0
        %1218 = vmatpush2.bf16.msra.mxu0 0
        %1219 = vmatprep.subr.bf16.mxu0 0
        %1220 = vmatpush2.bf16.msra.mxu0 0
        %1221 = vmatprep.subr.bf16.mxu0 0
        %1222 = vmatpush2.bf16.msra.mxu0 0
        %1223 = vmatprep.subr.bf16.mxu0 0
        %1224 = vmatpush2.bf16.msra.mxu0 0
        %1225 = vmatprep.mubr.bf16.mxu0 0
        %1226 = vmatmul.mubr.bf16.gmra.mxu0 %v411
        %v1227 = vpop.f32.mrf.mxu0
        %v1228 = vadd.f32 0.0, %v1227
        %v1229 = vpop.f32.mrf.mxu0
        %v1230 = vpop.f32.mrf.mxu0
        %v1231 = vpop.f32.mrf.mxu0
        %1232 = vdwg.mxu0
        %v1234 = vcombine.high %v1228, %v1228
        %v1236 = vunpack.c.l.s4 1966171168
        %v1237 = vunpack.c.0.s8 %v1236
        %v1238 = vlaneseq
        %v1239 = vshrl.u32 %v1238, 7
        %v1240 = vsub.s32 %v1237, %v1239
        %v1241 = vrot.slane %v1228, %v1240
        %v1243 = vunpack.c.l.s4 1966171168
        %v1244 = vunpack.c.0.s8 %v1243
        %v1245 = vlaneseq
        %v1246 = vshrl.u32 %v1245, 7
        %v1247 = vsub.s32 %v1244, %v1246
        %v1248 = vrot.slane %v1234, %v1247
        %v1249 = vcombine.high %v1241, %v1241
        %v1250 = vcombine.high %v1248, %v1248
        %v1252 = vunpack.c.l.s4 1966171168
        %v1253 = vunpack.c.0.s8 %v1252
        %v1254 = vlaneseq
        %v1255 = vshrl.u32 %v1254, 7
        %v1256 = vsub.s32 %v1253, %v1255
        %v1257 = vrot.slane %v1241, %v1256
        %v1259 = vunpack.c.l.s4 1966171168
        %v1260 = vunpack.c.0.s8 %v1259
        %v1261 = vlaneseq
        %v1262 = vshrl.u32 %v1261, 7
        %v1263 = vsub.s32 %v1260, %v1262
        %v1264 = vrot.slane %v1248, %v1263
        %v1266 = vunpack.c.l.s4 1966171168
        %v1267 = vunpack.c.0.s8 %v1266
        %v1268 = vlaneseq
        %v1269 = vshrl.u32 %v1268, 7
        %v1270 = vsub.s32 %v1267, %v1269
        %v1271 = vrot.slane %v1249, %v1270
        %v1273 = vunpack.c.l.s4 1966171168
        %v1274 = vunpack.c.0.s8 %v1273
        %v1275 = vlaneseq
        %v1276 = vshrl.u32 %v1275, 7
        %v1277 = vsub.s32 %v1274, %v1276
        %v1278 = vrot.slane %v1250, %v1277
        %v1279 = vcombine.high %v1257, %v1257
        %v1280 = vcombine.high %v1264, %v1264
        %v1281 = vcombine.high %v1271, %v1271
        %v1282 = vcombine.high %v1278, %v1278
        %1291 = vst.msk [vmem:[%s289 + $0x5] sm:$0x1] %vm515, %v1257
        %1292 = vst.msk [vmem:[%s289 + $0xd] sm:$0x1] %vm515, %v1271
        %1293 = vst.msk [vmem:[%s289 + $0x15] sm:$0x1] %vm515, %v1279
        %1294 = vst.msk [vmem:[%s289 + $0x1d] sm:$0x1] %vm515, %v1281
        %1295 = vst.msk [vmem:[%s289 + $0x25] sm:$0x1] %vm515, %v1264
        %1296 = vst.msk [vmem:[%s289 + $0x2d] sm:$0x1] %vm515, %v1278
        %1297 = vst.msk [vmem:[%s289 + $0x35] sm:$0x1] %vm515, %v1280
        %1298 = vst.msk [vmem:[%s289 + $0x3d] sm:$0x1] %vm515, %v1282
        %v1299 = vld [vmem:[%s1018] sm:$0xf]
        %v1300 = vmul.f32 %v1299, %v321
        %v1301 = vmul.f32 %v1299, %v327
        %1303 = vrot.lane.b32.xlu0 %v1301, 127
        %v1304 = vpop.permute.xlu0 %1303
        %v1306 = vadd.f32 %v1300, %v1304
        %v1307 = vmul.f32 %v1299, %v338
        %1309 = vrot.lane.b32.xlu0 %v1307, 126
        %v1310 = vpop.permute.xlu0 %1309
        %v1312 = vadd.f32 %v1306, %v1310
        %v1313 = vld [vmem:[%s1173] sm:$0xf]
        %v1314 = vmul.f32 %v1313, %v351
        %v1315 = vadd.f32 %v1312, %v1314
        %v1316 = vmul.f32 %v1313, %v358
        %1318 = vrot.lane.b32.xlu0 %v1316, 127
        %v1319 = vpop.permute.xlu0 %1318
        %v1321 = vadd.f32 %v1315, %v1319
        %v1322 = vmul.f32 %v1313, %v369
        %1324 = vrot.lane.b32.xlu0 %v1322, 126
        %v1325 = vpop.permute.xlu0 %1324
        %v1327 = vadd.f32 %v1321, %v1325
        %v1328 = vld [vmem:[%s260] sm:$0xf]
        %v1329 = vmul.f32 %v1328, %v382
        %v1330 = vadd.f32 %v1327, %v1329
        %v1331 = vmul.f32 %v1328, %v389
        %1333 = vrot.lane.b32.xlu0 %v1331, 127
        %v1334 = vpop.permute.xlu0 %1333
        %v1336 = vadd.f32 %v1330, %v1334
        %v1337 = vmul.f32 %v1328, %v400
        %1339 = vrot.lane.b32.xlu0 %v1337, 126
        %v1340 = vpop.permute.xlu0 %1339
        %v1342 = vadd.f32 %v1336, %v1340
        %v1343 = vpack.c.bf16 %v1342, %v1342
        %v1345 = vsel %vm413, %v1343, 0
        %1347 = vmatprep.subr.bf16.mxu0 0
        %1348 = vmatpush1.bf16.msra.mxu0 0
        %1349 = vmatprep.subr.bf16.mxu0 0
        %1350 = vmatpush1.bf16.msra.mxu0 0
        %1351 = vmatprep.subr.bf16.mxu0 0
        %1352 = vmatpush1.bf16.msra.mxu0 0
        %1353 = vmatprep.subr.bf16.mxu0 0
        %1354 = vmatpush1.bf16.msra.mxu0 0
        %1355 = vmatprep.subr.bf16.mxu0 0
        %1356 = vmatpush1.bf16.msra.mxu0 0
        %1357 = vmatprep.subr.bf16.mxu0 0
        %1358 = vmatpush1.bf16.msra.mxu0 0
        %1359 = vmatprep.subr.bf16.mxu0 0
        %1360 = vmatpush1.bf16.msra.mxu0 0
        %1361 = vmatprep.subr.bf16.mxu0 0
        %1362 = vmatpush1.bf16.msra.mxu0 %v1345
        %1363 = vmatprep.subr.bf16.mxu0 0
        %1364 = vmatpush2.bf16.msra.mxu0 0
        %1365 = vmatprep.subr.bf16.mxu0 0
        %1366 = vmatpush2.bf16.msra.mxu0 0
        %1367 = vmatprep.subr.bf16.mxu0 0
        %1368 = vmatpush2.bf16.msra.mxu0 0
        %1369 = vmatprep.subr.bf16.mxu0 0
        %1370 = vmatpush2.bf16.msra.mxu0 0
        %1371 = vmatprep.subr.bf16.mxu0 0
        %1372 = vmatpush2.bf16.msra.mxu0 0
        %1373 = vmatprep.subr.bf16.mxu0 0
        %1374 = vmatpush2.bf16.msra.mxu0 0
        %1375 = vmatprep.subr.bf16.mxu0 0
        %1376 = vmatpush2.bf16.msra.mxu0 0
        %1377 = vmatprep.subr.bf16.mxu0 0
        %1378 = vmatpush2.bf16.msra.mxu0 0
        %1379 = vmatprep.mubr.bf16.mxu0 0
        %1380 = vmatmul.mubr.bf16.gmra.mxu0 %v411
        %v1381 = vpop.f32.mrf.mxu0
        %v1382 = vadd.f32 0.0, %v1381
        %v1383 = vpop.f32.mrf.mxu0
        %v1384 = vpop.f32.mrf.mxu0
        %v1385 = vpop.f32.mrf.mxu0
        %1386 = vdwg.mxu0
        %v1388 = vcombine.high %v1382, %v1382
        %v1390 = vunpack.c.l.s4 1966171168
        %v1391 = vunpack.c.0.s8 %v1390
        %v1392 = vlaneseq
        %v1393 = vshrl.u32 %v1392, 7
        %v1394 = vsub.s32 %v1391, %v1393
        %v1395 = vrot.slane %v1382, %v1394
        %v1397 = vunpack.c.l.s4 1966171168
        %v1398 = vunpack.c.0.s8 %v1397
        %v1399 = vlaneseq
        %v1400 = vshrl.u32 %v1399, 7
        %v1401 = vsub.s32 %v1398, %v1400
        %v1402 = vrot.slane %v1388, %v1401
        %v1403 = vcombine.high %v1395, %v1395
        %v1404 = vcombine.high %v1402, %v1402
        %v1406 = vunpack.c.l.s4 1966171168
        %v1407 = vunpack.c.0.s8 %v1406
        %v1408 = vlaneseq
        %v1409 = vshrl.u32 %v1408, 7
        %v1410 = vsub.s32 %v1407, %v1409
        %v1411 = vrot.slane %v1395, %v1410
        %v1413 = vunpack.c.l.s4 1966171168
        %v1414 = vunpack.c.0.s8 %v1413
        %v1415 = vlaneseq
        %v1416 = vshrl.u32 %v1415, 7
        %v1417 = vsub.s32 %v1414, %v1416
        %v1418 = vrot.slane %v1402, %v1417
        %v1420 = vunpack.c.l.s4 1966171168
        %v1421 = vunpack.c.0.s8 %v1420
        %v1422 = vlaneseq
        %v1423 = vshrl.u32 %v1422, 7
        %v1424 = vsub.s32 %v1421, %v1423
        %v1425 = vrot.slane %v1403, %v1424
        %v1427 = vunpack.c.l.s4 1966171168
        %v1428 = vunpack.c.0.s8 %v1427
        %v1429 = vlaneseq
        %v1430 = vshrl.u32 %v1429, 7
        %v1431 = vsub.s32 %v1428, %v1430
        %v1432 = vrot.slane %v1404, %v1431
        %v1433 = vcombine.high %v1411, %v1411
        %v1434 = vcombine.high %v1418, %v1418
        %v1435 = vcombine.high %v1425, %v1425
        %v1436 = vcombine.high %v1432, %v1432
        %1445 = vst.msk [vmem:[%s289 + $0x6] sm:$0x1] %vm515, %v1411
        %1446 = vst.msk [vmem:[%s289 + $0xe] sm:$0x1] %vm515, %v1425
        %1447 = vst.msk [vmem:[%s289 + $0x16] sm:$0x1] %vm515, %v1433
        %1448 = vst.msk [vmem:[%s289 + $0x1e] sm:$0x1] %vm515, %v1435
        %1449 = vst.msk [vmem:[%s289 + $0x26] sm:$0x1] %vm515, %v1418
        %1450 = vst.msk [vmem:[%s289 + $0x2e] sm:$0x1] %vm515, %v1432
        %1451 = vst.msk [vmem:[%s289 + $0x36] sm:$0x1] %vm515, %v1434
        %1452 = vst.msk [vmem:[%s289 + $0x3e] sm:$0x1] %vm515, %v1436
        %v1453 = vld [vmem:[%s1173] sm:$0xf]
        %v1454 = vmul.f32 %v1453, %v321
        %v1455 = vmul.f32 %v1453, %v327
        %1457 = vrot.lane.b32.xlu0 %v1455, 127
        %v1458 = vpop.permute.xlu0 %1457
        %v1460 = vadd.f32 %v1454, %v1458
        %v1461 = vmul.f32 %v1453, %v338
        %1463 = vrot.lane.b32.xlu0 %v1461, 126
        %v1464 = vpop.permute.xlu0 %1463
        %v1466 = vadd.f32 %v1460, %v1464
        %v1467 = vld [vmem:[%s260] sm:$0xf]
        %v1468 = vmul.f32 %v1467, %v351
        %v1469 = vadd.f32 %v1466, %v1468
        %v1470 = vmul.f32 %v1467, %v358
        %1472 = vrot.lane.b32.xlu0 %v1470, 127
        %v1473 = vpop.permute.xlu0 %1472
        %v1475 = vadd.f32 %v1469, %v1473
        %v1476 = vmul.f32 %v1467, %v369
        %1478 = vrot.lane.b32.xlu0 %v1476, 126
        %v1479 = vpop.permute.xlu0 %1478
        %v1481 = vadd.f32 %v1475, %v1479
        %s1482 = scalar_lea.vmem %s260, 4 [#allocation5]
        %v1483 = vld [vmem:[%s1482] sm:$0xf]
        %v1484 = vmul.f32 %v1483, %v382
        %v1485 = vadd.f32 %v1481, %v1484
        %v1486 = vmul.f32 %v1483, %v389
        %1488 = vrot.lane.b32.xlu0 %v1486, 127
        %v1489 = vpop.permute.xlu0 %1488
        %v1491 = vadd.f32 %v1485, %v1489
        %v1492 = vmul.f32 %v1483, %v400
        %1494 = vrot.lane.b32.xlu0 %v1492, 126
        %v1495 = vpop.permute.xlu0 %1494
        %v1497 = vadd.f32 %v1491, %v1495
        %v1498 = vpack.c.bf16 %v1497, %v1497
        %v1500 = vsel %vm413, %v1498, 0
        %1502 = vmatprep.subr.bf16.mxu0 0
        %1503 = vmatpush1.bf16.msra.mxu0 0
        %1504 = vmatprep.subr.bf16.mxu0 0
        %1505 = vmatpush1.bf16.msra.mxu0 0
        %1506 = vmatprep.subr.bf16.mxu0 0
        %1507 = vmatpush1.bf16.msra.mxu0 0
        %1508 = vmatprep.subr.bf16.mxu0 0
        %1509 = vmatpush1.bf16.msra.mxu0 0
        %1510 = vmatprep.subr.bf16.mxu0 0
        %1511 = vmatpush1.bf16.msra.mxu0 0
        %1512 = vmatprep.subr.bf16.mxu0 0
        %1513 = vmatpush1.bf16.msra.mxu0 0
        %1514 = vmatprep.subr.bf16.mxu0 0
        %1515 = vmatpush1.bf16.msra.mxu0 0
        %1516 = vmatprep.subr.bf16.mxu0 0
        %1517 = vmatpush1.bf16.msra.mxu0 %v1500
        %1518 = vmatprep.subr.bf16.mxu0 0
        %1519 = vmatpush2.bf16.msra.mxu0 0
        %1520 = vmatprep.subr.bf16.mxu0 0
        %1521 = vmatpush2.bf16.msra.mxu0 0
        %1522 = vmatprep.subr.bf16.mxu0 0
        %1523 = vmatpush2.bf16.msra.mxu0 0
        %1524 = vmatprep.subr.bf16.mxu0 0
        %1525 = vmatpush2.bf16.msra.mxu0 0
        %1526 = vmatprep.subr.bf16.mxu0 0
        %1527 = vmatpush2.bf16.msra.mxu0 0
        %1528 = vmatprep.subr.bf16.mxu0 0
        %1529 = vmatpush2.bf16.msra.mxu0 0
        %1530 = vmatprep.subr.bf16.mxu0 0
        %1531 = vmatpush2.bf16.msra.mxu0 0
        %1532 = vmatprep.subr.bf16.mxu0 0
        %1533 = vmatpush2.bf16.msra.mxu0 0
        %1534 = vmatprep.mubr.bf16.mxu0 0
        %1535 = vmatmul.mubr.bf16.gmra.mxu0 %v411
        %v1536 = vpop.f32.mrf.mxu0
        %v1537 = vadd.f32 0.0, %v1536
        %v1538 = vpop.f32.mrf.mxu0
        %v1539 = vpop.f32.mrf.mxu0
        %v1540 = vpop.f32.mrf.mxu0
        %1541 = vdwg.mxu0
        %v1543 = vcombine.high %v1537, %v1537
        %v1545 = vunpack.c.l.s4 1966171168
        %v1546 = vunpack.c.0.s8 %v1545
        %v1547 = vlaneseq
        %v1548 = vshrl.u32 %v1547, 7
        %v1549 = vsub.s32 %v1546, %v1548
        %v1550 = vrot.slane %v1537, %v1549
        %v1552 = vunpack.c.l.s4 1966171168
        %v1553 = vunpack.c.0.s8 %v1552
        %v1554 = vlaneseq
        %v1555 = vshrl.u32 %v1554, 7
        %v1556 = vsub.s32 %v1553, %v1555
        %v1557 = vrot.slane %v1543, %v1556
        %v1558 = vcombine.high %v1550, %v1550
        %v1559 = vcombine.high %v1557, %v1557
        %v1561 = vunpack.c.l.s4 1966171168
        %v1562 = vunpack.c.0.s8 %v1561
        %v1563 = vlaneseq
        %v1564 = vshrl.u32 %v1563, 7
        %v1565 = vsub.s32 %v1562, %v1564
        %v1566 = vrot.slane %v1550, %v1565
        %v1568 = vunpack.c.l.s4 1966171168
        %v1569 = vunpack.c.0.s8 %v1568
        %v1570 = vlaneseq
        %v1571 = vshrl.u32 %v1570, 7
        %v1572 = vsub.s32 %v1569, %v1571
        %v1573 = vrot.slane %v1557, %v1572
        %v1575 = vunpack.c.l.s4 1966171168
        %v1576 = vunpack.c.0.s8 %v1575
        %v1577 = vlaneseq
        %v1578 = vshrl.u32 %v1577, 7
        %v1579 = vsub.s32 %v1576, %v1578
        %v1580 = vrot.slane %v1558, %v1579
        %v1582 = vunpack.c.l.s4 1966171168
        %v1583 = vunpack.c.0.s8 %v1582
        %v1584 = vlaneseq
        %v1585 = vshrl.u32 %v1584, 7
        %v1586 = vsub.s32 %v1583, %v1585
        %v1587 = vrot.slane %v1559, %v1586
        %v1588 = vcombine.high %v1566, %v1566
        %v1589 = vcombine.high %v1573, %v1573
        %v1590 = vcombine.high %v1580, %v1580
        %v1591 = vcombine.high %v1587, %v1587
        %1600 = vst.msk [vmem:[%s289 + $0x7] sm:$0x1] %vm515, %v1566
        %1601 = vst.msk [vmem:[%s289 + $0xf] sm:$0x1] %vm515, %v1580
        %1602 = vst.msk [vmem:[%s289 + $0x17] sm:$0x1] %vm515, %v1588
        %1603 = vst.msk [vmem:[%s289 + $0x1f] sm:$0x1] %vm515, %v1590
        %1604 = vst.msk [vmem:[%s289 + $0x27] sm:$0x1] %vm515, %v1573
        %1605 = vst.msk [vmem:[%s289 + $0x2f] sm:$0x1] %vm515, %v1587
        %1606 = vst.msk [vmem:[%s289 + $0x37] sm:$0x1] %vm515, %v1589
        %1607 = vst.msk [vmem:[%s289 + $0x3f] sm:$0x1] %vm515, %v1591
        %s1608 = sand.u32 %s148, 1
        %s1609 = scalar_lea.sflag [#allocation4], %s1608
        %s1610 = sand.u32 %s148, 1
        %s1611 = smul.addr %s1610, 64
        %s1612 = scalar_lea.vmem [#allocation7], %s1611
        // Predicated region
        $region45: #{tpu_custom_call.1} parent=35 // pred_check
          %p1613 = pneg %p158
        $region46: #{tpu_custom_call.1} parent=35 // pred_check_branch
          %1615 = sbr.rel (%p1613) target = $region48
        $region47: #{tpu_custom_call.1} parent=35 // pred_region
          %s1617 = ssub.s32 1024, 1024
          %1618 = vsyncadd %s1609, %s1617
          %s1619 = smul.addr %s28, 16
          %s1620 = sadd.s32 %s29, %s1619
          %s1621 = smul.addr %s1620, 128
          %s1622 = scalar_lea.hbm %s4, %s1621
          %s1623 = sshll.u32 %s1612, 4
          %s1624 = int_to_ptr.vmem [resolvable:$true] %s1623
          %1629 = dma.vmem_to_hbm [thread:$0]  %s1624, 1024, %s1622, %s1609, 128, 256, 8
        $region48: #{tpu_custom_call.1} parent=35 // pred_fallthru
          _
      $region36: #{tpu_custom_call.1} parent=5 // pred_fallthru
        _
      %p1630 = scmp.le.s32.totalorder 2, %s19
      // Predicated region
      $region49: #{tpu_custom_call.1} parent=5 // pred_check
        %p1631 = pneg %p1630
      $region50: #{tpu_custom_call.1} parent=5 // pred_check_branch
        %1633 = sbr.rel (%p1631) target = $region52
      $region51: #{tpu_custom_call.1} parent=5 // pred_region
        %s1634 = ssub.s32 %s19, 2
        // Predicated region
        $region53: #{tpu_custom_call.1} parent=51 // pred_check
          %p1635 = pneg %p164
        $region54: #{tpu_custom_call.1} parent=51 // pred_check_branch
          %1637 = sbr.rel (%p1635) target = $region56
        $region55: #{tpu_custom_call.1} parent=51 // pred_region
          %s1638 = sand.u32 %s149, 1
          %s1639 = scalar_lea.sflag [#allocation4], %s1638
          %s1640 = sand.u32 %s149, 1
          %s1641 = smul.addr %s1640, 64
          %s1642 = scalar_lea.vmem [#allocation7], %s1641
          %1643 = dma.done %s1639, 1024
        $region56: #{tpu_custom_call.1} parent=51 // pred_fallthru
          _
      $region52: #{tpu_custom_call.1} parent=5 // pred_fallthru
        _
    $region6: #{tpu_custom_call.1} parent=1 // loop_footer
      %s23 = sadd.s32 1, %s19
    $region7: #{tpu_custom_call.1} parent=1 // loop_footer_branch
      %18 = sbr.rel target = $region3
    $region8: #{tpu_custom_call.1} parent=1 // loop_exit
      _
    %1644 = vsyncpa [#allocation3], 1
    %s1645 = scalar_lea.sflag [#allocation3], 1
    %1646 = vsyncpa %s1645, 1
    %1647 = vsyncpa [#allocation6], 1
    %s1648 = scalar_lea.sflag [#allocation6], 1
    %1649 = vsyncpa %s1648, 1
    %1650 = vsyncpa [#allocation4], 1
    %s1651 = scalar_lea.sflag [#allocation4], 1
    %1652 = vsyncpa %s1651, 1

</llo_original>
